<compile_context>
chip_gen: v7x
topology: tpu7x:2x2x1
jax: 0.10.0
libtpu: 0.0.40
codegen_flags: <defaults>
</compile_context>

<pallas_src>
import functools

import jax
import jax.numpy as jnp
from jax.experimental import pallas as pl
from jax.experimental.pallas import tpu as pltpu

EPS = 1e-5


def _round_up(x, m):
    return ((x + m - 1) // m) * m


def _layernorm(h, gamma, beta):
    mu = jnp.mean(h, axis=-1, keepdims=True)
    var = jnp.mean((h - mu) * (h - mu), axis=-1, keepdims=True)
    return (h - mu) * jax.lax.rsqrt(var + EPS) * gamma + beta


def rep_net_kernel(num_blocks,
                   x_ref, w0_ref, b0_ref, g0_ref, be0_ref,
                   lng_ref, lnb_ref, w1_ref, b1_ref, w2_ref, b2_ref,
                   o_ref):
    # RunningMeanStd (eval) is already folded into w0/b0 by the wrapper.
    x = x_ref[...].astype(jnp.float32)

    # mlp: Linear(D_in_pad -> hidden).  Matmul operands may be bf16; accumulate f32.
    h = jnp.dot(x.astype(w0_ref.dtype), w0_ref[...],
                preferred_element_type=jnp.float32) + b0_ref[...]

    # LayerNorm(hidden) + tanh — keep statistics / transcendentals in f32.
    h = _layernorm(h, g0_ref[...], be0_ref[...])
    h = jnp.tanh(h)

    # ImproveResidualBlock x num_blocks (statically unrolled; num_blocks is small).
    for blk in range(num_blocks):
        identity = h
        out = _layernorm(h, lng_ref[blk], lnb_ref[blk])
        out = jnp.dot(out.astype(w1_ref.dtype), w1_ref[blk],
                      preferred_element_type=jnp.float32) + b1_ref[blk]
        out = jnp.maximum(out, 0.0)
        out = jnp.dot(out.astype(w2_ref.dtype), w2_ref[blk],
                      preferred_element_type=jnp.float32) + b2_ref[blk]
        h = out + identity

    o_ref[...] = h.astype(o_ref.dtype)


def representation_network(x, params, num_blocks, *, tile_b=512,
                           matmul_dtype=jnp.float32):
    """x: (B, D_in) float32. params: dict of jnp arrays (see init_params)."""
    B, d_in = x.shape
    hidden = params["w0"].shape[1]
    rep = params["blk_w1"].shape[-1]

    # --- Fold eval-mode RunningMeanStd into the first Linear -----------------
    inv_std = jax.lax.rsqrt(params["running_var"] + EPS)          # (1, d_in)
    w0 = params["w0"] * inv_std.reshape(d_in, 1)                  # row-scale
    b0 = params["b0"] - (params["running_mean"] * inv_std) @ params["w0"]

    # --- Pad D_in to a multiple of 128 (clean MXU K dim, unmasked loads) -----
    d_pad = _round_up(d_in, 128)
    if d_pad != d_in:
        x = jnp.pad(x, ((0, 0), (0, d_pad - d_in)))
        w0 = jnp.pad(w0, ((0, d_pad - d_in), (0, 0)))

    # --- Batch tiling ---------------------------------------------------------
    tile_b = max(8, min(tile_b, _round_up(B, 8)))
    b_pad = _round_up(B, tile_b)
    if b_pad != B:
        x = jnp.pad(x, ((0, b_pad - B), (0, 0)))
    grid = (b_pad // tile_b,)

    # Matmul operand dtype (bf16 recommended on v6e/v7x); biases/LN stay f32.
    w0 = w0.astype(matmul_dtype)
    w1 = params["blk_w1"].astype(matmul_dtype)
    w2 = params["blk_w2"].astype(matmul_dtype)

    # Weights: full-array blocks with constant index_maps -> resident in VMEM.
    resident2 = lambda shape: pl.BlockSpec(shape, lambda i: (0, 0))
    resident3 = lambda shape: pl.BlockSpec(shape, lambda i: (0, 0, 0))

    itemsize = jnp.dtype(matmul_dtype).itemsize
    flops = 2 * b_pad * (d_pad * hidden + 2 * num_blocks * hidden * rep)
    bytes_accessed = (x.size * 4
                      + (w0.size + w1.size + w2.size) * itemsize
                      + b_pad * hidden * 4)
    transcendentals = b_pad * hidden  # tanh

    out = pl.pallas_call(
        functools.partial(rep_net_kernel, num_blocks),
        out_shape=jax.ShapeDtypeStruct((b_pad, hidden), jnp.float32),
        grid=grid,
        in_specs=[
            pl.BlockSpec((tile_b, d_pad), lambda i: (i, 0)),   # x (pipelined)
            resident2((d_pad, hidden)),                        # w0 (folded)
            resident2((1, hidden)),                            # b0 (folded)
            resident2((1, hidden)),                            # ln gamma
            resident2((1, hidden)),                            # ln beta
            resident3((num_blocks, 1, hidden)),                # block ln gamma
            resident3((num_blocks, 1, hidden)),                # block ln beta
            resident3((num_blocks, hidden, rep)),              # block w1
            resident3((num_blocks, 1, rep)),                   # block b1
            resident3((num_blocks, rep, hidden)),              # block w2
            resident3((num_blocks, 1, hidden)),                # block b2
        ],
        out_specs=pl.BlockSpec((tile_b, hidden), lambda i: (i, 0)),
        compiler_params=pltpu.CompilerParams(
            dimension_semantics=("parallel",)),
        cost_estimate=pl.CostEstimate(flops=flops,
                                      transcendentals=transcendentals,
                                      bytes_accessed=bytes_accessed),
    )(x, w0, b0, params["ln_g"], params["ln_b"],
      params["blk_ln_g"], params["blk_ln_b"],
      w1, params["blk_b1"], w2, params["blk_b2"])

    return out[:B]


def init_params(key, d_in, hidden, rep, num_blocks):
    """Deterministic synthetic parameters. Linear weights are stored pre-
    transposed to (in, out) so the kernel computes x @ W (== torch x @ W.T).
    RunningMeanStd buffers are given non-trivial values to exercise the fold."""
    ks = jax.random.split(key, 6 + 4 * num_blocks)
    scale = 0.05
    p = {
        "running_mean": 0.1 * jax.random.normal(ks[0], (1, d_in), jnp.float32),
        "running_var": 0.5 + jax.random.uniform(ks[1], (1, d_in), jnp.float32),
        # mlp Linear(d_in, hidden)
        "w0": scale * jax.random.normal(ks[2], (d_in, hidden), jnp.float32),
        "b0": scale * jax.random.normal(ks[3], (1, hidden), jnp.float32),
        # LayerNorm(hidden)
        "ln_g": jnp.ones((1, hidden), jnp.float32),
        "ln_b": jnp.zeros((1, hidden), jnp.float32),
        # Residual blocks (stacked along leading block axis)
        "blk_ln_g": jnp.ones((num_blocks, 1, hidden), jnp.float32),
        "blk_ln_b": jnp.zeros((num_blocks, 1, hidden), jnp.float32),
        "blk_w1": scale * jax.random.normal(ks[4], (num_blocks, hidden, rep), jnp.float32),
        "blk_b1": scale * jax.random.normal(ks[5], (num_blocks, 1, rep), jnp.float32),
        "blk_w2": jnp.stack([scale * jax.random.normal(ks[6 + i], (rep, hidden), jnp.float32)
                             for i in range(num_blocks)]),
        "blk_b2": jnp.stack([scale * jax.random.normal(ks[6 + num_blocks + i], (1, hidden), jnp.float32)
                             for i in range(num_blocks)]),
    }
    return p


def reference(x, params, num_blocks):
    """Pure-JAX reference mirroring the PyTorch forward (eval mode), f32."""
    x = (x - params["running_mean"]) / jnp.sqrt(params["running_var"] + EPS)
    h = x @ params["w0"] + params["b0"]
    h = _layernorm(h, params["ln_g"], params["ln_b"])
    h = jnp.tanh(h)
    for i in range(num_blocks):
        idt = h
        out = _layernorm(h, params["blk_ln_g"][i], params["blk_ln_b"][i])
        out = out @ params["blk_w1"][i] + params["blk_b1"][i]
        out = jnp.maximum(out, 0.0)
        out = out @ params["blk_w2"][i] + params["blk_b2"][i]
        h = out + idt
    return h


if __name__ == "__main__":
    # observation_shape=16, n_stacked_obs=4 -> D_in=64; hidden_shape=128;
    # rep_net_shape=128; num_blocks=2; batch=300 (so the batch grid has >1 tile).
    B, OBS, N_STACK, NUM_BLOCKS, REP, HIDDEN = 300, 16, 4, 2, 128, 128
    D_IN = OBS * N_STACK

    key = jax.random.PRNGKey(0)
    kx, kp = jax.random.split(key)
    x = jax.random.normal(kx, (B, D_IN), jnp.float32)
    params = init_params(kp, D_IN, HIDDEN, REP, NUM_BLOCKS)

    ref = reference(x, params, NUM_BLOCKS)

    # f32 matmul path (exact): tight tolerance vs the PyTorch-equivalent reference.
    out = representation_network(x, params, NUM_BLOCKS, tile_b=128,
                                 matmul_dtype=jnp.float32)
    out = jax.block_until_ready(out)
    assert out.shape == (B, HIDDEN)
    assert jnp.allclose(out, ref, atol=1e-4, rtol=1e-4), "f32 path mismatch vs reference"

    # bf16 matmul-operand path (v6e/v7x MXU-native); f32 accumulation & statistics.
    out_bf16 = representation_network(x, params, NUM_BLOCKS, tile_b=128,
                                      matmul_dtype=jnp.bfloat16)
    out_bf16 = jax.block_until_ready(out_bf16)
    max_err = float(jnp.max(jnp.abs(out_bf16 - ref)))
    assert max_err < 1e-1, f"bf16 path error too large: {max_err}"

    print("KERNEL_OK")
</pallas_src>

<mosaic_0001>
module attributes {stable_mosaic.version = 11 : i64} {
  func.func @rep_net_kernel(%arg0: i32, %arg1: memref<128x128xf32, #tpu.memory_space<vmem>>, %arg2: memref<128x128xf32, #tpu.memory_space<vmem>>, %arg3: memref<1x128xf32, #tpu.memory_space<vmem>>, %arg4: memref<1x128xf32, #tpu.memory_space<vmem>>, %arg5: memref<1x128xf32, #tpu.memory_space<vmem>>, %arg6: memref<2x1x128xf32, #tpu.memory_space<vmem>>, %arg7: memref<2x1x128xf32, #tpu.memory_space<vmem>>, %arg8: memref<2x128x128xf32, #tpu.memory_space<vmem>>, %arg9: memref<2x1x128xf32, #tpu.memory_space<vmem>>, %arg10: memref<2x128x128xf32, #tpu.memory_space<vmem>>, %arg11: memref<2x1x128xf32, #tpu.memory_space<vmem>>, %arg12: memref<128x128xf32, #tpu.memory_space<vmem>>) attributes {dimension_semantics = [#tpu.dimension_semantics<parallel>], iteration_bounds = array<i64: 3>, scalar_prefetch = 0 : i64, scratch_operands = 0 : i64, tpu.core_type = #tpu.core_type<tc>, window_params = [{transform_indices = @transform_0, window_bounds = array<i64: 128, 128>}, {pipeline_mode = #tpu.pipeline_mode<synchronous>, transform_indices = @transform_1, window_bounds = array<i64: 128, 128>}, {pipeline_mode = #tpu.pipeline_mode<synchronous>, transform_indices = @transform_2, window_bounds = array<i64: 1, 128>}, {pipeline_mode = #tpu.pipeline_mode<synchronous>, transform_indices = @transform_3, window_bounds = array<i64: 1, 128>}, {pipeline_mode = #tpu.pipeline_mode<synchronous>, transform_indices = @transform_4, window_bounds = array<i64: 1, 128>}, {pipeline_mode = #tpu.pipeline_mode<synchronous>, transform_indices = @transform_5, window_bounds = array<i64: 2, 1, 128>}, {pipeline_mode = #tpu.pipeline_mode<synchronous>, transform_indices = @transform_6, window_bounds = array<i64: 2, 1, 128>}, {pipeline_mode = #tpu.pipeline_mode<synchronous>, transform_indices = @transform_7, window_bounds = array<i64: 2, 128, 128>}, {pipeline_mode = #tpu.pipeline_mode<synchronous>, transform_indices = @transform_8, window_bounds = array<i64: 2, 1, 128>}, {pipeline_mode = #tpu.pipeline_mode<synchronous>, transform_indices = @transform_9, window_bounds = array<i64: 2, 128, 128>}, {pipeline_mode = #tpu.pipeline_mode<synchronous>, transform_indices = @transform_10, window_bounds = array<i64: 2, 1, 128>}, {transform_indices = @transform_11, window_bounds = array<i64: 128, 128>}]} {
    %c0 = arith.constant 0 : index
    %c0_0 = arith.constant 0 : index
    %0 = vector.load %arg1[%c0, %c0_0] : memref<128x128xf32, #tpu.memory_space<vmem>>, vector<128x128xf32>
    %c0_1 = arith.constant 0 : index
    %c0_2 = arith.constant 0 : index
    %1 = vector.load %arg2[%c0_1, %c0_2] : memref<128x128xf32, #tpu.memory_space<vmem>>, vector<128x128xf32>
    %cst = arith.constant dense<0.000000e+00> : vector<128x128xf32>
    %2 = tpu.matmul %0, %1, %cst {dimension_numbers = #tpu.dot_dimension_numbers<[1], [0], [0], [1], [0, 0, 1, 1], [], []>} : vector<128x128xf32>, vector<128x128xf32>, vector<128x128xf32> -> vector<128x128xf32>
    %c0_3 = arith.constant 0 : index
    %c0_4 = arith.constant 0 : index
    %3 = vector.load %arg3[%c0_3, %c0_4] : memref<1x128xf32, #tpu.memory_space<vmem>>, vector<1x128xf32>
    %4 = vector.broadcast %3 : vector<1x128xf32> to vector<128x128xf32>
    %5 = arith.addf %2, %4 : vector<128x128xf32>
    %c0_5 = arith.constant 0 : index
    %c0_6 = arith.constant 0 : index
    %6 = vector.load %arg4[%c0_5, %c0_6] : memref<1x128xf32, #tpu.memory_space<vmem>>, vector<1x128xf32>
    %c0_7 = arith.constant 0 : index
    %c0_8 = arith.constant 0 : index
    %7 = vector.load %arg5[%c0_7, %c0_8] : memref<1x128xf32, #tpu.memory_space<vmem>>, vector<1x128xf32>
    %cst_9 = arith.constant dense<0.000000e+00> : vector<128xf32>
    %8 = vector.multi_reduction <add>, %5, %cst_9 [1] : vector<128x128xf32> to vector<128xf32>
    %9 = vector.shape_cast %8 : vector<128xf32> to vector<128x1xf32>
    %cst_10 = arith.constant 1.280000e+02 : f32
    %10 = vector.broadcast %cst_10 : f32 to vector<128x1xf32>
    %11 = arith.divf %9, %10 : vector<128x1xf32>
    %12 = vector.broadcast %11 : vector<128x1xf32> to vector<128x128xf32>
    %13 = arith.subf %5, %12 : vector<128x128xf32>
    %14 = vector.broadcast %11 : vector<128x1xf32> to vector<128x128xf32>
    %15 = arith.subf %5, %14 : vector<128x128xf32>
    %16 = arith.mulf %13, %15 : vector<128x128xf32>
    %cst_11 = arith.constant dense<0.000000e+00> : vector<128xf32>
    %17 = vector.multi_reduction <add>, %16, %cst_11 [1] : vector<128x128xf32> to vector<128xf32>
    %18 = vector.shape_cast %17 : vector<128xf32> to vector<128x1xf32>
    %cst_12 = arith.constant 1.280000e+02 : f32
    %19 = vector.broadcast %cst_12 : f32 to vector<128x1xf32>
    %20 = arith.divf %18, %19 : vector<128x1xf32>
    %21 = vector.broadcast %11 : vector<128x1xf32> to vector<128x128xf32>
    %22 = arith.subf %5, %21 : vector<128x128xf32>
    %cst_13 = arith.constant 9.99999974E-6 : f32
    %23 = vector.broadcast %cst_13 : f32 to vector<128x1xf32>
    %24 = arith.addf %20, %23 : vector<128x1xf32>
    %25 = math.rsqrt %24 : vector<128x1xf32>
    %26 = vector.broadcast %25 : vector<128x1xf32> to vector<128x128xf32>
    %27 = arith.mulf %22, %26 : vector<128x128xf32>
    %28 = vector.broadcast %6 : vector<1x128xf32> to vector<128x128xf32>
    %29 = arith.mulf %27, %28 : vector<128x128xf32>
    %30 = vector.broadcast %7 : vector<1x128xf32> to vector<128x128xf32>
    %31 = arith.addf %29, %30 : vector<128x128xf32>
    %32 = math.tanh %31 : vector<128x128xf32>
    %c0_14 = arith.constant 0 : index
    %c0_15 = arith.constant 0 : index
    %c0_16 = arith.constant 0 : index
    %33 = vector.load %arg6[%c0_14, %c0_15, %c0_16] : memref<2x1x128xf32, #tpu.memory_space<vmem>>, vector<1x1x128xf32>
    %34 = vector.shape_cast %33 : vector<1x1x128xf32> to vector<1x128xf32>
    %c0_17 = arith.constant 0 : index
    %c0_18 = arith.constant 0 : index
    %c0_19 = arith.constant 0 : index
    %35 = vector.load %arg7[%c0_17, %c0_18, %c0_19] : memref<2x1x128xf32, #tpu.memory_space<vmem>>, vector<1x1x128xf32>
    %36 = vector.shape_cast %35 : vector<1x1x128xf32> to vector<1x128xf32>
    %cst_20 = arith.constant dense<0.000000e+00> : vector<128xf32>
    %37 = vector.multi_reduction <add>, %32, %cst_20 [1] : vector<128x128xf32> to vector<128xf32>
    %38 = vector.shape_cast %37 : vector<128xf32> to vector<128x1xf32>
    %cst_21 = arith.constant 1.280000e+02 : f32
    %39 = vector.broadcast %cst_21 : f32 to vector<128x1xf32>
    %40 = arith.divf %38, %39 : vector<128x1xf32>
    %41 = vector.broadcast %40 : vector<128x1xf32> to vector<128x128xf32>
    %42 = arith.subf %32, %41 : vector<128x128xf32>
    %43 = vector.broadcast %40 : vector<128x1xf32> to vector<128x128xf32>
    %44 = arith.subf %32, %43 : vector<128x128xf32>
    %45 = arith.mulf %42, %44 : vector<128x128xf32>
    %cst_22 = arith.constant dense<0.000000e+00> : vector<128xf32>
    %46 = vector.multi_reduction <add>, %45, %cst_22 [1] : vector<128x128xf32> to vector<128xf32>
    %47 = vector.shape_cast %46 : vector<128xf32> to vector<128x1xf32>
    %cst_23 = arith.constant 1.280000e+02 : f32
    %48 = vector.broadcast %cst_23 : f32 to vector<128x1xf32>
    %49 = arith.divf %47, %48 : vector<128x1xf32>
    %50 = vector.broadcast %40 : vector<128x1xf32> to vector<128x128xf32>
    %51 = arith.subf %32, %50 : vector<128x128xf32>
    %cst_24 = arith.constant 9.99999974E-6 : f32
    %52 = vector.broadcast %cst_24 : f32 to vector<128x1xf32>
    %53 = arith.addf %49, %52 : vector<128x1xf32>
    %54 = math.rsqrt %53 : vector<128x1xf32>
    %55 = vector.broadcast %54 : vector<128x1xf32> to vector<128x128xf32>
    %56 = arith.mulf %51, %55 : vector<128x128xf32>
    %57 = vector.broadcast %34 : vector<1x128xf32> to vector<128x128xf32>
    %58 = arith.mulf %56, %57 : vector<128x128xf32>
    %59 = vector.broadcast %36 : vector<1x128xf32> to vector<128x128xf32>
    %60 = arith.addf %58, %59 : vector<128x128xf32>
    %c0_25 = arith.constant 0 : index
    %c0_26 = arith.constant 0 : index
    %c0_27 = arith.constant 0 : index
    %61 = vector.load %arg8[%c0_25, %c0_26, %c0_27] : memref<2x128x128xf32, #tpu.memory_space<vmem>>, vector<1x128x128xf32>
    %62 = vector.shape_cast %61 : vector<1x128x128xf32> to vector<128x128xf32>
    %cst_28 = arith.constant dense<0.000000e+00> : vector<128x128xf32>
    %63 = tpu.matmul %60, %62, %cst_28 {dimension_numbers = #tpu.dot_dimension_numbers<[1], [0], [0], [1], [0, 0, 1, 1], [], []>} : vector<128x128xf32>, vector<128x128xf32>, vector<128x128xf32> -> vector<128x128xf32>
    %c0_29 = arith.constant 0 : index
    %c0_30 = arith.constant 0 : index
    %c0_31 = arith.constant 0 : index
    %64 = vector.load %arg9[%c0_29, %c0_30, %c0_31] : memref<2x1x128xf32, #tpu.memory_space<vmem>>, vector<1x1x128xf32>
    %65 = vector.shape_cast %64 : vector<1x1x128xf32> to vector<1x128xf32>
    %66 = vector.broadcast %65 : vector<1x128xf32> to vector<128x128xf32>
    %67 = arith.addf %63, %66 : vector<128x128xf32>
    %cst_32 = arith.constant 0.000000e+00 : f32
    %68 = vector.broadcast %cst_32 : f32 to vector<128x128xf32>
    %69 = arith.maximumf %67, %68 : vector<128x128xf32>
    %c0_33 = arith.constant 0 : index
    %c0_34 = arith.constant 0 : index
    %c0_35 = arith.constant 0 : index
    %70 = vector.load %arg10[%c0_33, %c0_34, %c0_35] : memref<2x128x128xf32, #tpu.memory_space<vmem>>, vector<1x128x128xf32>
    %71 = vector.shape_cast %70 : vector<1x128x128xf32> to vector<128x128xf32>
    %cst_36 = arith.constant dense<0.000000e+00> : vector<128x128xf32>
    %72 = tpu.matmul %69, %71, %cst_36 {dimension_numbers = #tpu.dot_dimension_numbers<[1], [0], [0], [1], [0, 0, 1, 1], [], []>} : vector<128x128xf32>, vector<128x128xf32>, vector<128x128xf32> -> vector<128x128xf32>
    %c0_37 = arith.constant 0 : index
    %c0_38 = arith.constant 0 : index
    %c0_39 = arith.constant 0 : index
    %73 = vector.load %arg11[%c0_37, %c0_38, %c0_39] : memref<2x1x128xf32, #tpu.memory_space<vmem>>, vector<1x1x128xf32>
    %74 = vector.shape_cast %73 : vector<1x1x128xf32> to vector<1x128xf32>
    %75 = vector.broadcast %74 : vector<1x128xf32> to vector<128x128xf32>
    %76 = arith.addf %72, %75 : vector<128x128xf32>
    %77 = arith.addf %76, %32 : vector<128x128xf32>
    %c1 = arith.constant 1 : index
    %c0_40 = arith.constant 0 : index
    %c0_41 = arith.constant 0 : index
    %78 = vector.load %arg6[%c1, %c0_40, %c0_41] : memref<2x1x128xf32, #tpu.memory_space<vmem>>, vector<1x1x128xf32>
    %79 = vector.shape_cast %78 : vector<1x1x128xf32> to vector<1x128xf32>
    %c1_42 = arith.constant 1 : index
    %c0_43 = arith.constant 0 : index
    %c0_44 = arith.constant 0 : index
    %80 = vector.load %arg7[%c1_42, %c0_43, %c0_44] : memref<2x1x128xf32, #tpu.memory_space<vmem>>, vector<1x1x128xf32>
    %81 = vector.shape_cast %80 : vector<1x1x128xf32> to vector<1x128xf32>
    %cst_45 = arith.constant dense<0.000000e+00> : vector<128xf32>
    %82 = vector.multi_reduction <add>, %77, %cst_45 [1] : vector<128x128xf32> to vector<128xf32>
    %83 = vector.shape_cast %82 : vector<128xf32> to vector<128x1xf32>
    %cst_46 = arith.constant 1.280000e+02 : f32
    %84 = vector.broadcast %cst_46 : f32 to vector<128x1xf32>
    %85 = arith.divf %83, %84 : vector<128x1xf32>
    %86 = vector.broadcast %85 : vector<128x1xf32> to vector<128x128xf32>
    %87 = arith.subf %77, %86 : vector<128x128xf32>
    %88 = vector.broadcast %85 : vector<128x1xf32> to vector<128x128xf32>
    %89 = arith.subf %77, %88 : vector<128x128xf32>
    %90 = arith.mulf %87, %89 : vector<128x128xf32>
    %cst_47 = arith.constant dense<0.000000e+00> : vector<128xf32>
    %91 = vector.multi_reduction <add>, %90, %cst_47 [1] : vector<128x128xf32> to vector<128xf32>
    %92 = vector.shape_cast %91 : vector<128xf32> to vector<128x1xf32>
    %cst_48 = arith.constant 1.280000e+02 : f32
    %93 = vector.broadcast %cst_48 : f32 to vector<128x1xf32>
    %94 = arith.divf %92, %93 : vector<128x1xf32>
    %95 = vector.broadcast %85 : vector<128x1xf32> to vector<128x128xf32>
    %96 = arith.subf %77, %95 : vector<128x128xf32>
    %cst_49 = arith.constant 9.99999974E-6 : f32
    %97 = vector.broadcast %cst_49 : f32 to vector<128x1xf32>
    %98 = arith.addf %94, %97 : vector<128x1xf32>
    %99 = math.rsqrt %98 : vector<128x1xf32>
    %100 = vector.broadcast %99 : vector<128x1xf32> to vector<128x128xf32>
    %101 = arith.mulf %96, %100 : vector<128x128xf32>
    %102 = vector.broadcast %79 : vector<1x128xf32> to vector<128x128xf32>
    %103 = arith.mulf %101, %102 : vector<128x128xf32>
    %104 = vector.broadcast %81 : vector<1x128xf32> to vector<128x128xf32>
    %105 = arith.addf %103, %104 : vector<128x128xf32>
    %c1_50 = arith.constant 1 : index
    %c0_51 = arith.constant 0 : index
    %c0_52 = arith.constant 0 : index
    %106 = vector.load %arg8[%c1_50, %c0_51, %c0_52] : memref<2x128x128xf32, #tpu.memory_space<vmem>>, vector<1x128x128xf32>
    %107 = vector.shape_cast %106 : vector<1x128x128xf32> to vector<128x128xf32>
    %cst_53 = arith.constant dense<0.000000e+00> : vector<128x128xf32>
    %108 = tpu.matmul %105, %107, %cst_53 {dimension_numbers = #tpu.dot_dimension_numbers<[1], [0], [0], [1], [0, 0, 1, 1], [], []>} : vector<128x128xf32>, vector<128x128xf32>, vector<128x128xf32> -> vector<128x128xf32>
    %c1_54 = arith.constant 1 : index
    %c0_55 = arith.constant 0 : index
    %c0_56 = arith.constant 0 : index
    %109 = vector.load %arg9[%c1_54, %c0_55, %c0_56] : memref<2x1x128xf32, #tpu.memory_space<vmem>>, vector<1x1x128xf32>
    %110 = vector.shape_cast %109 : vector<1x1x128xf32> to vector<1x128xf32>
    %111 = vector.broadcast %110 : vector<1x128xf32> to vector<128x128xf32>
    %112 = arith.addf %108, %111 : vector<128x128xf32>
    %cst_57 = arith.constant 0.000000e+00 : f32
    %113 = vector.broadcast %cst_57 : f32 to vector<128x128xf32>
    %114 = arith.maximumf %112, %113 : vector<128x128xf32>
    %c1_58 = arith.constant 1 : index
    %c0_59 = arith.constant 0 : index
    %c0_60 = arith.constant 0 : index
    %115 = vector.load %arg10[%c1_58, %c0_59, %c0_60] : memref<2x128x128xf32, #tpu.memory_space<vmem>>, vector<1x128x128xf32>
    %116 = vector.shape_cast %115 : vector<1x128x128xf32> to vector<128x128xf32>
    %cst_61 = arith.constant dense<0.000000e+00> : vector<128x128xf32>
    %117 = tpu.matmul %114, %116, %cst_61 {dimension_numbers = #tpu.dot_dimension_numbers<[1], [0], [0], [1], [0, 0, 1, 1], [], []>} : vector<128x128xf32>, vector<128x128xf32>, vector<128x128xf32> -> vector<128x128xf32>
    %c1_62 = arith.constant 1 : index
    %c0_63 = arith.constant 0 : index
    %c0_64 = arith.constant 0 : index
    %118 = vector.load %arg11[%c1_62, %c0_63, %c0_64] : memref<2x1x128xf32, #tpu.memory_space<vmem>>, vector<1x1x128xf32>
    %119 = vector.shape_cast %118 : vector<1x1x128xf32> to vector<1x128xf32>
    %120 = vector.broadcast %119 : vector<1x128xf32> to vector<128x128xf32>
    %121 = arith.addf %117, %120 : vector<128x128xf32>
    %122 = arith.addf %121, %77 : vector<128x128xf32>
    %c0_65 = arith.constant 0 : index
    %c0_66 = arith.constant 0 : index
    %123 = vector.load %arg12[%c0_65, %c0_66] : memref<128x128xf32, #tpu.memory_space<vmem>>, vector<128x128xf32>
    tpu.vector_store %arg12[%c0_65, %c0_66], %122 {strides = array<i32>} : memref<128x128xf32, #tpu.memory_space<vmem>>, vector<128x128xf32>,
    return
  }
  func.func @transform_0(%arg0: i32) -> (i32, i32) {
    %c0_i32 = arith.constant 0 : i32
    %c0_i32_0 = arith.constant 0 : i32
    return %arg0, %c0_i32 : i32, i32
  }
  func.func @transform_1(%arg0: i32) -> (i32, i32) {
    %c0_i32 = arith.constant 0 : i32
    %c0_i32_0 = arith.constant 0 : i32
    %c0_i32_1 = arith.constant 0 : i32
    return %c0_i32, %c0_i32_0 : i32, i32
  }
  func.func @transform_2(%arg0: i32) -> (i32, i32) {
    %c0_i32 = arith.constant 0 : i32
    %c0_i32_0 = arith.constant 0 : i32
    %c0_i32_1 = arith.constant 0 : i32
    return %c0_i32, %c0_i32_0 : i32, i32
  }
  func.func @transform_3(%arg0: i32) -> (i32, i32) {
    %c0_i32 = arith.constant 0 : i32
    %c0_i32_0 = arith.constant 0 : i32
    %c0_i32_1 = arith.constant 0 : i32
    return %c0_i32, %c0_i32_0 : i32, i32
  }
  func.func @transform_4(%arg0: i32) -> (i32, i32) {
    %c0_i32 = arith.constant 0 : i32
    %c0_i32_0 = arith.constant 0 : i32
    %c0_i32_1 = arith.constant 0 : i32
    return %c0_i32, %c0_i32_0 : i32, i32
  }
  func.func @transform_5(%arg0: i32) -> (i32, i32, i32) {
    %c0_i32 = arith.constant 0 : i32
    %c0_i32_0 = arith.constant 0 : i32
    %c0_i32_1 = arith.constant 0 : i32
    %c0_i32_2 = arith.constant 0 : i32
    return %c0_i32, %c0_i32_0, %c0_i32_1 : i32, i32, i32
  }
  func.func @transform_6(%arg0: i32) -> (i32, i32, i32) {
    %c0_i32 = arith.constant 0 : i32
    %c0_i32_0 = arith.constant 0 : i32
    %c0_i32_1 = arith.constant 0 : i32
    %c0_i32_2 = arith.constant 0 : i32
    return %c0_i32, %c0_i32_0, %c0_i32_1 : i32, i32, i32
  }
  func.func @transform_7(%arg0: i32) -> (i32, i32, i32) {
    %c0_i32 = arith.constant 0 : i32
    %c0_i32_0 = arith.constant 0 : i32
    %c0_i32_1 = arith.constant 0 : i32
    %c0_i32_2 = arith.constant 0 : i32
    return %c0_i32, %c0_i32_0, %c0_i32_1 : i32, i32, i32
  }
  func.func @transform_8(%arg0: i32) -> (i32, i32, i32) {
    %c0_i32 = arith.constant 0 : i32
    %c0_i32_0 = arith.constant 0 : i32
    %c0_i32_1 = arith.constant 0 : i32
    %c0_i32_2 = arith.constant 0 : i32
    return %c0_i32, %c0_i32_0, %c0_i32_1 : i32, i32, i32
  }
  func.func @transform_9(%arg0: i32) -> (i32, i32, i32) {
    %c0_i32 = arith.constant 0 : i32
    %c0_i32_0 = arith.constant 0 : i32
    %c0_i32_1 = arith.constant 0 : i32
    %c0_i32_2 = arith.constant 0 : i32
    return %c0_i32, %c0_i32_0, %c0_i32_1 : i32, i32, i32
  }
  func.func @transform_10(%arg0: i32) -> (i32, i32, i32) {
    %c0_i32 = arith.constant 0 : i32
    %c0_i32_0 = arith.constant 0 : i32
    %c0_i32_1 = arith.constant 0 : i32
    %c0_i32_2 = arith.constant 0 : i32
    return %c0_i32, %c0_i32_0, %c0_i32_1 : i32, i32, i32
  }
  func.func @transform_11(%arg0: i32) -> (i32, i32) {
    %c0_i32 = arith.constant 0 : i32
    %c0_i32_0 = arith.constant 0 : i32
    return %arg0, %c0_i32 : i32, i32
  }
}

</mosaic_0001>

<llo_original>
// kernel: tpu_custom_call.1
$region0: #{tpu_custom_call.1}
  #allocation0 [shape = 'u32[]', space=smem, size = 0x4, offset = 0x4, fixed_abs, tag = 'smem constant byte address 0x4 - core index']
  #allocation1 [shape = 'u32[144,128]{1,0:T(1,128)}', space=vmem, size = 0x12000, scoped, tag = 'internal scratch']
  %s0 = inlined_call_operand.hbm [shape: f32[384,128], index: 0, kind: input, shape index: {}]
  %s1 = inlined_call_operand.hbm [shape: f32[128,128], index: 1, kind: input, shape index: {}]
  %s2 = inlined_call_operand.vmem [shape: f32[1,128], index: 2, kind: input, shape index: {}]
  %s3 = inlined_call_operand.vmem [shape: f32[1,128], index: 3, kind: input, shape index: {}]
  %s4 = inlined_call_operand.vmem [shape: f32[1,128], index: 4, kind: input, shape index: {}]
  %s5 = inlined_call_operand.vmem [shape: f32[2,1,128], index: 5, kind: input, shape index: {}]
  %s6 = inlined_call_operand.vmem [shape: f32[2,1,128], index: 6, kind: input, shape index: {}]
  %s7 = inlined_call_operand.hbm [shape: f32[2,128,128], index: 7, kind: input, shape index: {}]
  %s8 = inlined_call_operand.vmem [shape: f32[2,1,128], index: 8, kind: input, shape index: {}]
  %s9 = inlined_call_operand.hbm [shape: f32[2,128,128], index: 9, kind: input, shape index: {}]
  %s10 = inlined_call_operand.vmem [shape: f32[2,1,128], index: 10, kind: input, shape index: {}]
  %s11 = inlined_call_operand.hbm [shape: f32[384,128], index: 11, kind: output, shape index: {}]
  %s12 = sld [smem:[#allocation0]]
  $region93: #{tpu_custom_call.1} parent=0
    _
  %s14 = ssub.s32 1, %s12
  %s15 = scalar_select 0, %s14, %s12
  $region1: #{tpu_custom_call.1} parent=0
    #allocation2 [shape = 'u8[131072]{0}', space=vmem, size = 0x20000, scoped, tag = 'input window, operand 0']
    #allocation3 [shape = 's32[2]{0}', space=sflag, size = 0x8, scoped, tag = 'scoped memory for tpu_custom_call.1']
    #allocation4 [shape = 's32[2]{0}', space=sflag, size = 0x8, scoped, tag = 'scoped memory for tpu_custom_call.1']
    #allocation5 [shape = 'u8[65536]{0}', space=vmem, size = 0x10000, scoped, tag = 'input window, operand 1, single buffered']
    #allocation6 [shape = 's32[1]{0}', space=sflag, size = 0x4, scoped, tag = 'scoped memory for tpu_custom_call.1']
    #allocation7 [shape = 'u8[131072]{0}', space=vmem, size = 0x20000, scoped, tag = 'input window, operand 7, single buffered']
    #allocation8 [shape = 'u8[131072]{0}', space=vmem, size = 0x20000, scoped, tag = 'input window, operand 9, single buffered']
    #allocation9 [shape = 's32[1]{0}', space=sflag, size = 0x4, scoped, tag = 'scoped memory for tpu_custom_call.1']
    #allocation10 [shape = 'u8[131072]{0}', space=vmem, size = 0x20000, scoped, tag = 'output window, operand 0']
    %16 = vsyncpa [#allocation3], 0
    %s17 = scalar_lea.sflag [#allocation3], 1
    %18 = vsyncpa %s17, 0
    %19 = vsyncpa [#allocation6], 0
    %20 = vsyncpa [#allocation9], 0
    %21 = vsyncpa [#allocation4], 0
    %s22 = scalar_lea.sflag [#allocation4], 1
    %23 = vsyncpa %s22, 0
    loop: start=0, step=1, limit=5
    $region2: #{tpu_custom_call.1} parent=1 // loop_pre_header
      _
    $region3: #{tpu_custom_call.1} parent=1 // loop_header
      %s25 = sphi 0, %s29
      %p26 = scmp.ge.s32.totalorder %s25, 5
      %s35 = sphi 0, %s37
      %s38 = sphi 0, %s35
      %s39 = sphi 0, %s38
      %s55 = sphi 0, %s39
      %s59 = sphi 0, %s59
      %s61 = sphi 0, %s59
      %s62 = sphi 0, %s61
      %s76 = sphi 0, %s62
      %s80 = sphi 0, %s80
      %s82 = sphi 0, %s80
      %s83 = sphi 0, %s82
      %s97 = sphi 0, %s83
      %s101 = sphi 0, %s101
      %s103 = sphi 0, %s101
      %s104 = sphi 0, %s103
      %s118 = sphi 0, %s104
      %s122 = sphi 0, %s122
      %s124 = sphi 0, %s122
      %s125 = sphi 0, %s124
      %s139 = sphi 0, %s125
      %s143 = sphi 0, %s143
      %s145 = sphi 0, %s143
      %s146 = sphi 0, %s145
      %s160 = sphi 0, %s146
      %s164 = sphi 0, %s164
      %s166 = sphi 0, %s164
      %s167 = sphi 0, %s166
      %s181 = sphi 0, %s167
      %s185 = sphi 0, %s185
      %s187 = sphi 0, %s185
      %s188 = sphi 0, %s187
      %s202 = sphi 0, %s188
      %s206 = sphi 0, %s206
      %s208 = sphi 0, %s206
      %s209 = sphi 0, %s208
      %s223 = sphi 0, %s209
      %s227 = sphi 0, %s227
      %s229 = sphi 0, %s227
      %s230 = sphi 0, %s229
      %s244 = sphi 0, %s230
      %s248 = sphi 0, %s248
      %s250 = sphi 0, %s248
      %s251 = sphi 0, %s250
      %s265 = sphi 0, %s251
      %s271 = sphi 0, %s273
      %s274 = sphi 0, %s271
      %s275 = sphi 0, %s274
      %s291 = sphi 0, %s275
    $region4: #{tpu_custom_call.1} parent=1 // loop_header_branch
      %28 = sbr.rel (%p26) target = $region8
    $region5: #{tpu_custom_call.1} parent=1 // loop_body
      %s30 = ssub.s32 %s25, 1
      %s31 = ssub.s32 %s25, 2
      %s32 = sadd.s32 %s25, 1
      %s33 = ssub.s32 %s25, %s32
      %p34 = scmp.eq.s32.totalorder %s33, 0
      %s36 = sadd.s32 %s35, 1
      %s37 = scalar_select %p34, %s35, %s36
      %p40 = pneg %p34
      %p41 = scmp.eq.s32.totalorder %s25, 2
      %p42 = por %p40, %p41
      %p43 = scmp.ne.s32.totalorder %s35, %s38
      %p44 = scmp.eq.s32.totalorder %s25, 0
      %p45 = por %p43, %p44
      %p46 = scmp.ne.s32.totalorder %s35, %s38
      %p47 = scmp.eq.s32.totalorder %s30, 2
      %p48 = por %p46, %p47
      %p49 = scmp.ne.s32.totalorder %s38, %s39
      %p50 = scmp.eq.s32.totalorder %s30, 0
      %p51 = por %p49, %p50
      %p52 = scmp.ne.s32.totalorder %s38, %s39
      %p53 = scmp.eq.s32.totalorder %s31, 2
      %p54 = por %p52, %p53
      %p56 = scmp.ne.s32.totalorder %s39, %s55
      %p57 = scmp.eq.s32.totalorder %s31, 0
      %p58 = por %p56, %p57
      %s60 = sadd.s32 %s59, 1
      %p63 = scmp.eq.s32.totalorder %s25, 2
      %p64 = scmp.ne.s32.totalorder %s59, %s61
      %p65 = scmp.eq.s32.totalorder %s25, 0
      %p66 = por %p64, %p65
      %p67 = scmp.ne.s32.totalorder %s59, %s61
      %p68 = scmp.eq.s32.totalorder %s30, 2
      %p69 = por %p67, %p68
      %p70 = scmp.ne.s32.totalorder %s61, %s62
      %p71 = scmp.eq.s32.totalorder %s30, 0
      %p72 = por %p70, %p71
      %p73 = scmp.ne.s32.totalorder %s61, %s62
      %p74 = scmp.eq.s32.totalorder %s31, 2
      %p75 = por %p73, %p74
      %p77 = scmp.ne.s32.totalorder %s62, %s76
      %p78 = scmp.eq.s32.totalorder %s31, 0
      %p79 = por %p77, %p78
      %s81 = sadd.s32 %s80, 1
      %p84 = scmp.eq.s32.totalorder %s25, 2
      %p85 = scmp.ne.s32.totalorder %s80, %s82
      %p86 = scmp.eq.s32.totalorder %s25, 0
      %p87 = por %p85, %p86
      %p88 = scmp.ne.s32.totalorder %s80, %s82
      %p89 = scmp.eq.s32.totalorder %s30, 2
      %p90 = por %p88, %p89
      %p91 = scmp.ne.s32.totalorder %s82, %s83
      %p92 = scmp.eq.s32.totalorder %s30, 0
      %p93 = por %p91, %p92
      %p94 = scmp.ne.s32.totalorder %s82, %s83
      %p95 = scmp.eq.s32.totalorder %s31, 2
      %p96 = por %p94, %p95
      %p98 = scmp.ne.s32.totalorder %s83, %s97
      %p99 = scmp.eq.s32.totalorder %s31, 0
      %p100 = por %p98, %p99
      %s102 = sadd.s32 %s101, 1
      %p105 = scmp.eq.s32.totalorder %s25, 2
      %p106 = scmp.ne.s32.totalorder %s101, %s103
      %p107 = scmp.eq.s32.totalorder %s25, 0
      %p108 = por %p106, %p107
      %p109 = scmp.ne.s32.totalorder %s101, %s103
      %p110 = scmp.eq.s32.totalorder %s30, 2
      %p111 = por %p109, %p110
      %p112 = scmp.ne.s32.totalorder %s103, %s104
      %p113 = scmp.eq.s32.totalorder %s30, 0
      %p114 = por %p112, %p113
      %p115 = scmp.ne.s32.totalorder %s103, %s104
      %p116 = scmp.eq.s32.totalorder %s31, 2
      %p117 = por %p115, %p116
      %p119 = scmp.ne.s32.totalorder %s104, %s118
      %p120 = scmp.eq.s32.totalorder %s31, 0
      %p121 = por %p119, %p120
      %s123 = sadd.s32 %s122, 1
      %p126 = scmp.eq.s32.totalorder %s25, 2
      %p127 = scmp.ne.s32.totalorder %s122, %s124
      %p128 = scmp.eq.s32.totalorder %s25, 0
      %p129 = por %p127, %p128
      %p130 = scmp.ne.s32.totalorder %s122, %s124
      %p131 = scmp.eq.s32.totalorder %s30, 2
      %p132 = por %p130, %p131
      %p133 = scmp.ne.s32.totalorder %s124, %s125
      %p134 = scmp.eq.s32.totalorder %s30, 0
      %p135 = por %p133, %p134
      %p136 = scmp.ne.s32.totalorder %s124, %s125
      %p137 = scmp.eq.s32.totalorder %s31, 2
      %p138 = por %p136, %p137
      %p140 = scmp.ne.s32.totalorder %s125, %s139
      %p141 = scmp.eq.s32.totalorder %s31, 0
      %p142 = por %p140, %p141
      %s144 = sadd.s32 %s143, 1
      %p147 = scmp.eq.s32.totalorder %s25, 2
      %p148 = scmp.ne.s32.totalorder %s143, %s145
      %p149 = scmp.eq.s32.totalorder %s25, 0
      %p150 = por %p148, %p149
      %p151 = scmp.ne.s32.totalorder %s143, %s145
      %p152 = scmp.eq.s32.totalorder %s30, 2
      %p153 = por %p151, %p152
      %p154 = scmp.ne.s32.totalorder %s145, %s146
      %p155 = scmp.eq.s32.totalorder %s30, 0
      %p156 = por %p154, %p155
      %p157 = scmp.ne.s32.totalorder %s145, %s146
      %p158 = scmp.eq.s32.totalorder %s31, 2
      %p159 = por %p157, %p158
      %p161 = scmp.ne.s32.totalorder %s146, %s160
      %p162 = scmp.eq.s32.totalorder %s31, 0
      %p163 = por %p161, %p162
      %s165 = sadd.s32 %s164, 1
      %p168 = scmp.eq.s32.totalorder %s25, 2
      %p169 = scmp.ne.s32.totalorder %s164, %s166
      %p170 = scmp.eq.s32.totalorder %s25, 0
      %p171 = por %p169, %p170
      %p172 = scmp.ne.s32.totalorder %s164, %s166
      %p173 = scmp.eq.s32.totalorder %s30, 2
      %p174 = por %p172, %p173
      %p175 = scmp.ne.s32.totalorder %s166, %s167
      %p176 = scmp.eq.s32.totalorder %s30, 0
      %p177 = por %p175, %p176
      %p178 = scmp.ne.s32.totalorder %s166, %s167
      %p179 = scmp.eq.s32.totalorder %s31, 2
      %p180 = por %p178, %p179
      %p182 = scmp.ne.s32.totalorder %s167, %s181
      %p183 = scmp.eq.s32.totalorder %s31, 0
      %p184 = por %p182, %p183
      %s186 = sadd.s32 %s185, 1
      %p189 = scmp.eq.s32.totalorder %s25, 2
      %p190 = scmp.ne.s32.totalorder %s185, %s187
      %p191 = scmp.eq.s32.totalorder %s25, 0
      %p192 = por %p190, %p191
      %p193 = scmp.ne.s32.totalorder %s185, %s187
      %p194 = scmp.eq.s32.totalorder %s30, 2
      %p195 = por %p193, %p194
      %p196 = scmp.ne.s32.totalorder %s187, %s188
      %p197 = scmp.eq.s32.totalorder %s30, 0
      %p198 = por %p196, %p197
      %p199 = scmp.ne.s32.totalorder %s187, %s188
      %p200 = scmp.eq.s32.totalorder %s31, 2
      %p201 = por %p199, %p200
      %p203 = scmp.ne.s32.totalorder %s188, %s202
      %p204 = scmp.eq.s32.totalorder %s31, 0
      %p205 = por %p203, %p204
      %s207 = sadd.s32 %s206, 1
      %p210 = scmp.eq.s32.totalorder %s25, 2
      %p211 = scmp.ne.s32.totalorder %s206, %s208
      %p212 = scmp.eq.s32.totalorder %s25, 0
      %p213 = por %p211, %p212
      %p214 = scmp.ne.s32.totalorder %s206, %s208
      %p215 = scmp.eq.s32.totalorder %s30, 2
      %p216 = por %p214, %p215
      %p217 = scmp.ne.s32.totalorder %s208, %s209
      %p218 = scmp.eq.s32.totalorder %s30, 0
      %p219 = por %p217, %p218
      %p220 = scmp.ne.s32.totalorder %s208, %s209
      %p221 = scmp.eq.s32.totalorder %s31, 2
      %p222 = por %p220, %p221
      %p224 = scmp.ne.s32.totalorder %s209, %s223
      %p225 = scmp.eq.s32.totalorder %s31, 0
      %p226 = por %p224, %p225
      %s228 = sadd.s32 %s227, 1
      %p231 = scmp.eq.s32.totalorder %s25, 2
      %p232 = scmp.ne.s32.totalorder %s227, %s229
      %p233 = scmp.eq.s32.totalorder %s25, 0
      %p234 = por %p232, %p233
      %p235 = scmp.ne.s32.totalorder %s227, %s229
      %p236 = scmp.eq.s32.totalorder %s30, 2
      %p237 = por %p235, %p236
      %p238 = scmp.ne.s32.totalorder %s229, %s230
      %p239 = scmp.eq.s32.totalorder %s30, 0
      %p240 = por %p238, %p239
      %p241 = scmp.ne.s32.totalorder %s229, %s230
      %p242 = scmp.eq.s32.totalorder %s31, 2
      %p243 = por %p241, %p242
      %p245 = scmp.ne.s32.totalorder %s230, %s244
      %p246 = scmp.eq.s32.totalorder %s31, 0
      %p247 = por %p245, %p246
      %s249 = sadd.s32 %s248, 1
      %p252 = scmp.eq.s32.totalorder %s25, 2
      %p253 = scmp.ne.s32.totalorder %s248, %s250
      %p254 = scmp.eq.s32.totalorder %s25, 0
      %p255 = por %p253, %p254
      %p256 = scmp.ne.s32.totalorder %s248, %s250
      %p257 = scmp.eq.s32.totalorder %s30, 2
      %p258 = por %p256, %p257
      %p259 = scmp.ne.s32.totalorder %s250, %s251
      %p260 = scmp.eq.s32.totalorder %s30, 0
      %p261 = por %p259, %p260
      %p262 = scmp.ne.s32.totalorder %s250, %s251
      %p263 = scmp.eq.s32.totalorder %s31, 2
      %p264 = por %p262, %p263
      %p266 = scmp.ne.s32.totalorder %s251, %s265
      %p267 = scmp.eq.s32.totalorder %s31, 0
      %p268 = por %p266, %p267
      %s269 = ssub.s32 %s25, %s32
      %p270 = scmp.eq.s32.totalorder %s269, 0
      %s272 = sadd.s32 %s271, 1
      %s273 = scalar_select %p270, %s271, %s272
      %p276 = pneg %p270
      %p277 = scmp.eq.s32.totalorder %s25, 2
      %p278 = por %p276, %p277
      %p279 = scmp.ne.s32.totalorder %s271, %s274
      %p280 = scmp.eq.s32.totalorder %s25, 0
      %p281 = por %p279, %p280
      %p282 = scmp.ne.s32.totalorder %s271, %s274
      %p283 = scmp.eq.s32.totalorder %s30, 2
      %p284 = por %p282, %p283
      %p285 = scmp.ne.s32.totalorder %s274, %s275
      %p286 = scmp.eq.s32.totalorder %s30, 0
      %p287 = por %p285, %p286
      %p288 = scmp.ne.s32.totalorder %s274, %s275
      %p289 = scmp.eq.s32.totalorder %s31, 2
      %p290 = por %p288, %p289
      %p292 = scmp.ne.s32.totalorder %s275, %s291
      %p293 = scmp.eq.s32.totalorder %s31, 0
      %p294 = por %p292, %p293
      %p295 = scmp.le.s32.totalorder 1, %s25
      %p296 = scmp.lt.s32.totalorder %s25, 4
      %p297 = pnand %p295, %p296
      %p298 = pneg %p297
      // Predicated region
      $region9: #{tpu_custom_call.1} parent=5 // pred_check
        _
      $region10: #{tpu_custom_call.1} parent=5 // pred_check_branch
        %300 = sbr.rel (%p297) target = $region12
      $region11: #{tpu_custom_call.1} parent=5 // pred_region
        %s301 = ssub.s32 %s25, 1
        // Predicated region
        $region13: #{tpu_custom_call.1} parent=11 // pred_check
          %p302 = pneg %p72
        $region14: #{tpu_custom_call.1} parent=11 // pred_check_branch
          %304 = sbr.rel (%p302) target = $region16
        $region15: #{tpu_custom_call.1} parent=11 // pred_region
          %s306 = ssub.s32 2048, 2048
          %307 = vsyncadd [#allocation6], %s306
          %s308 = sshll.u32 [#allocation5], 4
          %s309 = int_to_ptr.vmem [resolvable:$true] %s308
          %314 = dma.hbm_to_vmem [thread:$0]  %s1, 2048, %s309, [#allocation6], 128, 128, 8
        $region16: #{tpu_custom_call.1} parent=11 // pred_fallthru
          _
        // Predicated region
        $region17: #{tpu_custom_call.1} parent=11 // pred_check
          %p315 = pneg %p93
        $region18: #{tpu_custom_call.1} parent=11 // pred_check_branch
          %317 = sbr.rel (%p315) target = $region20
        $region19: #{tpu_custom_call.1} parent=11 // pred_region
          _
        $region20: #{tpu_custom_call.1} parent=11 // pred_fallthru
          _
        // Predicated region
        $region21: #{tpu_custom_call.1} parent=11 // pred_check
          %p318 = pneg %p114
        $region22: #{tpu_custom_call.1} parent=11 // pred_check_branch
          %320 = sbr.rel (%p318) target = $region24
        $region23: #{tpu_custom_call.1} parent=11 // pred_region
          _
        $region24: #{tpu_custom_call.1} parent=11 // pred_fallthru
          _
        // Predicated region
        $region25: #{tpu_custom_call.1} parent=11 // pred_check
          %p321 = pneg %p135
        $region26: #{tpu_custom_call.1} parent=11 // pred_check_branch
          %323 = sbr.rel (%p321) target = $region28
        $region27: #{tpu_custom_call.1} parent=11 // pred_region
          _
        $region28: #{tpu_custom_call.1} parent=11 // pred_fallthru
          _
        // Predicated region
        $region29: #{tpu_custom_call.1} parent=11 // pred_check
          %p324 = pneg %p156
        $region30: #{tpu_custom_call.1} parent=11 // pred_check_branch
          %326 = sbr.rel (%p324) target = $region32
        $region31: #{tpu_custom_call.1} parent=11 // pred_region
          _
        $region32: #{tpu_custom_call.1} parent=11 // pred_fallthru
          _
        // Predicated region
        $region33: #{tpu_custom_call.1} parent=11 // pred_check
          %p327 = pneg %p177
        $region34: #{tpu_custom_call.1} parent=11 // pred_check_branch
          %329 = sbr.rel (%p327) target = $region36
        $region35: #{tpu_custom_call.1} parent=11 // pred_region
          _
        $region36: #{tpu_custom_call.1} parent=11 // pred_fallthru
          _
        // Predicated region
        $region37: #{tpu_custom_call.1} parent=11 // pred_check
          %p330 = pneg %p198
        $region38: #{tpu_custom_call.1} parent=11 // pred_check_branch
          %332 = sbr.rel (%p330) target = $region40
        $region39: #{tpu_custom_call.1} parent=11 // pred_region
          %s334 = ssub.s32 4096, 4096
          %335 = vsyncadd [#allocation6], %s334
          %s336 = sshll.u32 [#allocation7], 4
          %s337 = int_to_ptr.vmem [resolvable:$true] %s336
          %342 = dma.hbm_to_vmem [thread:$0]  %s7, 4096, %s337, [#allocation6], 128, 128, 8
        $region40: #{tpu_custom_call.1} parent=11 // pred_fallthru
          _
        // Predicated region
        $region41: #{tpu_custom_call.1} parent=11 // pred_check
          %p343 = pneg %p219
        $region42: #{tpu_custom_call.1} parent=11 // pred_check_branch
          %345 = sbr.rel (%p343) target = $region44
        $region43: #{tpu_custom_call.1} parent=11 // pred_region
          _
        $region44: #{tpu_custom_call.1} parent=11 // pred_fallthru
          _
        // Predicated region
        $region45: #{tpu_custom_call.1} parent=11 // pred_check
          %p346 = pneg %p240
        $region46: #{tpu_custom_call.1} parent=11 // pred_check_branch
          %348 = sbr.rel (%p346) target = $region48
        $region47: #{tpu_custom_call.1} parent=11 // pred_region
          %s350 = ssub.s32 4096, 4096
          %351 = vsyncadd [#allocation9], %s350
          %s352 = sshll.u32 [#allocation8], 4
          %s353 = int_to_ptr.vmem [resolvable:$true] %s352
          %358 = dma.hbm_to_vmem [thread:$0]  %s9, 4096, %s353, [#allocation9], 128, 128, 8
        $region48: #{tpu_custom_call.1} parent=11 // pred_fallthru
          _
        // Predicated region
        $region49: #{tpu_custom_call.1} parent=11 // pred_check
          %p359 = pneg %p261
        $region50: #{tpu_custom_call.1} parent=11 // pred_check_branch
          %361 = sbr.rel (%p359) target = $region52
        $region51: #{tpu_custom_call.1} parent=11 // pred_region
          _
        $region52: #{tpu_custom_call.1} parent=11 // pred_fallthru
          _
      $region12: #{tpu_custom_call.1} parent=5 // pred_fallthru
        _
      %p362 = scmp.lt.s32.totalorder %s25, 3
      // Predicated region
      $region53: #{tpu_custom_call.1} parent=5 // pred_check
        %p363 = pneg %p362
      $region54: #{tpu_custom_call.1} parent=5 // pred_check_branch
        %365 = sbr.rel (%p363) target = $region56
      $region55: #{tpu_custom_call.1} parent=5 // pred_region
        // Predicated region
        $region57: #{tpu_custom_call.1} parent=55 // pred_check
          %p366 = pneg %p45
        $region58: #{tpu_custom_call.1} parent=55 // pred_check_branch
          %368 = sbr.rel (%p366) target = $region60
        $region59: #{tpu_custom_call.1} parent=55 // pred_region
          %s369 = sand.u32 %s35, 1
          %s370 = scalar_lea.sflag [#allocation3], %s369
          %s371 = sand.u32 %s35, 1
          %s372 = smul.addr %s371, 128
          %s373 = scalar_lea.vmem [#allocation2], %s372
          %s374 = smul.u32 16, %s25
          %s376 = ssub.s32 2048, 2048
          %377 = vsyncadd %s370, %s376
          %s378 = smul.addr %s374, 128
          %s379 = scalar_lea.hbm %s0, %s378
          %s380 = sshll.u32 %s373, 4
          %s381 = int_to_ptr.vmem [resolvable:$true] %s380
          %386 = dma.hbm_to_vmem [thread:$0]  %s379, 2048, %s381, %s370, 128, 128, 8
        $region60: #{tpu_custom_call.1} parent=55 // pred_fallthru
          _
      $region56: #{tpu_custom_call.1} parent=5 // pred_fallthru
        _
      %p387 = scmp.le.s32.totalorder 1, %s25
      %p388 = scmp.lt.s32.totalorder %s25, 4
      %p389 = pnand %p387, %p388
      %p390 = pneg %p389
      // Predicated region
      $region61: #{tpu_custom_call.1} parent=5 // pred_check
        _
      $region62: #{tpu_custom_call.1} parent=5 // pred_check_branch
        %392 = sbr.rel (%p389) target = $region64
      $region63: #{tpu_custom_call.1} parent=5 // pred_region
        %s393 = ssub.s32 %s25, 1
        %s394 = sand.u32 %s38, 1
        %s395 = scalar_lea.sflag [#allocation3], %s394
        %s396 = sand.u32 %s38, 1
        %s397 = smul.addr %s396, 128
        %s398 = scalar_lea.vmem [#allocation2], %s397
        // Predicated region
        $region65: #{tpu_custom_call.1} parent=63 // pred_check
          %p399 = pneg %p51
        $region66: #{tpu_custom_call.1} parent=63 // pred_check_branch
          %401 = sbr.rel (%p399) target = $region68
        $region67: #{tpu_custom_call.1} parent=63 // pred_region
          %402 = dma.done %s395, 2048
        $region68: #{tpu_custom_call.1} parent=63 // pred_fallthru
          _
        // Predicated region
        $region69: #{tpu_custom_call.1} parent=63 // pred_check
          %p403 = pneg %p72
        $region70: #{tpu_custom_call.1} parent=63 // pred_check_branch
          %405 = sbr.rel (%p403) target = $region72
        $region71: #{tpu_custom_call.1} parent=63 // pred_region
          %406 = dma.done [#allocation6], 2048
        $region72: #{tpu_custom_call.1} parent=63 // pred_fallthru
          _
        // Predicated region
        $region73: #{tpu_custom_call.1} parent=63 // pred_check
          %p407 = pneg %p198
        $region74: #{tpu_custom_call.1} parent=63 // pred_check_branch
          %409 = sbr.rel (%p407) target = $region76
        $region75: #{tpu_custom_call.1} parent=63 // pred_region
          %410 = dma.done [#allocation6], 4096
        $region76: #{tpu_custom_call.1} parent=63 // pred_fallthru
          _
        // Predicated region
        $region77: #{tpu_custom_call.1} parent=63 // pred_check
          %p411 = pneg %p240
        $region78: #{tpu_custom_call.1} parent=63 // pred_check_branch
          %413 = sbr.rel (%p411) target = $region80
        $region79: #{tpu_custom_call.1} parent=63 // pred_region
          %414 = dma.done [#allocation9], 4096
        $region80: #{tpu_custom_call.1} parent=63 // pred_fallthru
          _
        %s415 = sand.u32 %s38, 1
        %s416 = scalar_lea.sflag [#allocation3], %s415
        %s417 = sand.u32 %s38, 1
        %s418 = smul.addr %s417, 128
        %s419 = scalar_lea.vmem [#allocation2], %s418
        %p420 = pneg %p51
        %p421 = pneg %p48
        %p422 = pneg %p72
        %p423 = pneg %p69
        %p424 = pneg %p93
        %p425 = pneg %p90
        %p426 = pneg %p114
        %p427 = pneg %p111
        %p428 = pneg %p135
        %p429 = pneg %p132
        %p430 = pneg %p156
        %p431 = pneg %p153
        %p432 = pneg %p177
        %p433 = pneg %p174
        %p434 = pneg %p198
        %p435 = pneg %p195
        %p436 = pneg %p219
        %p437 = pneg %p216
        %p438 = pneg %p240
        %p439 = pneg %p237
        %p440 = pneg %p261
        %p441 = pneg %p258
        %p442 = pneg %p287
        %p443 = pneg %p284
        %s444 = sand.u32 %s274, 1
        %s445 = scalar_lea.sflag [#allocation4], %s444
        %s446 = sand.u32 %s274, 1
        %s447 = smul.addr %s446, 128
        %s448 = scalar_lea.vmem [#allocation10], %s447
        %s449 = smul.u32 16, %s30
        %s450 = smul.u32 16, %s30
        %v451 = vld [vmem:[%s398] sm:$0xff]
        %v452 = vld [vmem:[%s398 + $0x8] sm:$0xff]
        %v453 = vld [vmem:[%s398 + $0x10] sm:$0xff]
        %v454 = vld [vmem:[%s398 + $0x18] sm:$0xff]
        %v455 = vld [vmem:[%s398 + $0x20] sm:$0xff]
        %v456 = vld [vmem:[%s398 + $0x28] sm:$0xff]
        %v457 = vld [vmem:[%s398 + $0x30] sm:$0xff]
        %v458 = vld [vmem:[%s398 + $0x38] sm:$0xff]
        %v459 = vld [vmem:[%s398 + $0x40] sm:$0xff]
        %v460 = vld [vmem:[%s398 + $0x48] sm:$0xff]
        %v461 = vld [vmem:[%s398 + $0x50] sm:$0xff]
        %v462 = vld [vmem:[%s398 + $0x58] sm:$0xff]
        %v463 = vld [vmem:[%s398 + $0x60] sm:$0xff]
        %v464 = vld [vmem:[%s398 + $0x68] sm:$0xff]
        %v465 = vld [vmem:[%s398 + $0x70] sm:$0xff]
        %v466 = vld [vmem:[%s398 + $0x78] sm:$0xff]
        %v467 = vld [vmem:[#allocation5] sm:$0xff]
        %v468 = vld [vmem:[#allocation5 + $0x8] sm:$0xff]
        %v469 = vld [vmem:[#allocation5 + $0x10] sm:$0xff]
        %v470 = vld [vmem:[#allocation5 + $0x18] sm:$0xff]
        %v471 = vld [vmem:[#allocation5 + $0x20] sm:$0xff]
        %v472 = vld [vmem:[#allocation5 + $0x28] sm:$0xff]
        %v473 = vld [vmem:[#allocation5 + $0x30] sm:$0xff]
        %v474 = vld [vmem:[#allocation5 + $0x38] sm:$0xff]
        %v475 = vld [vmem:[#allocation5 + $0x40] sm:$0xff]
        %v476 = vld [vmem:[#allocation5 + $0x48] sm:$0xff]
        %v477 = vld [vmem:[#allocation5 + $0x50] sm:$0xff]
        %v478 = vld [vmem:[#allocation5 + $0x58] sm:$0xff]
        %v479 = vld [vmem:[#allocation5 + $0x60] sm:$0xff]
        %v480 = vld [vmem:[#allocation5 + $0x68] sm:$0xff]
        %v481 = vld [vmem:[#allocation5 + $0x70] sm:$0xff]
        %v482 = vld [vmem:[#allocation5 + $0x78] sm:$0xff]
        %v483 = vld [vmem:[%s2] sm:$0x1]
        %v485 = vlaneseq
        %v486 = vshrl.u32 %v485, 7
        %v487 = vsub.s32 0, %v486
        %v488 = vrot.slane %v483, %v487
        %490 = vmatprep.subr.mxu0 0.0
        %491 = vmatpush1.msra.mxu0 %v467
        %492 = vmatprep.subr.mxu0 0.0
        %493 = vmatpush1.msra.mxu0 %v468
        %494 = vmatprep.subr.mxu0 0.0
        %495 = vmatpush1.msra.mxu0 %v469
        %496 = vmatprep.subr.mxu0 0.0
        %497 = vmatpush1.msra.mxu0 %v470
        %498 = vmatprep.subr.mxu0 0.0
        %499 = vmatpush1.msra.mxu0 %v471
        %500 = vmatprep.subr.mxu0 0.0
        %501 = vmatpush1.msra.mxu0 %v472
        %502 = vmatprep.subr.mxu0 0.0
        %503 = vmatpush1.msra.mxu0 %v473
        %504 = vmatprep.subr.mxu0 0.0
        %505 = vmatpush1.msra.mxu0 %v474
        %506 = vmatprep.subr.mxu0 0.0
        %507 = vmatpush1.msra.mxu0 %v475
        %508 = vmatprep.subr.mxu0 0.0
        %509 = vmatpush1.msra.mxu0 %v476
        %510 = vmatprep.subr.mxu0 0.0
        %511 = vmatpush1.msra.mxu0 %v477
        %512 = vmatprep.subr.mxu0 0.0
        %513 = vmatpush1.msra.mxu0 %v478
        %514 = vmatprep.subr.mxu0 0.0
        %515 = vmatpush1.msra.mxu0 %v479
        %516 = vmatprep.subr.mxu0 0.0
        %517 = vmatpush1.msra.mxu0 %v480
        %518 = vmatprep.subr.mxu0 0.0
        %519 = vmatpush1.msra.mxu0 %v481
        %520 = vmatprep.subr.mxu0 0.0
        %521 = vmatpush1.msra.mxu0 %v482
        %522 = vmatprep.subr.mxu0 0.0
        %523 = vmatpush1.msra.mxu0 0.0
        %524 = vmatprep.subr.mxu0 0.0
        %525 = vmatpush1.msra.mxu0 0.0
        %526 = vmatprep.subr.mxu0 0.0
        %527 = vmatpush1.msra.mxu0 0.0
        %528 = vmatprep.subr.mxu0 0.0
        %529 = vmatpush1.msra.mxu0 0.0
        %530 = vmatprep.subr.mxu0 0.0
        %531 = vmatpush1.msra.mxu0 0.0
        %532 = vmatprep.subr.mxu0 0.0
        %533 = vmatpush1.msra.mxu0 0.0
        %534 = vmatprep.subr.mxu0 0.0
        %535 = vmatpush1.msra.mxu0 0.0
        %536 = vmatprep.subr.mxu0 0.0
        %537 = vmatpush1.msra.mxu0 0.0
        %538 = vmatprep.subr.mxu0 0.0
        %539 = vmatpush1.msra.mxu0 0.0
        %540 = vmatprep.subr.mxu0 0.0
        %541 = vmatpush1.msra.mxu0 0.0
        %542 = vmatprep.subr.mxu0 0.0
        %543 = vmatpush1.msra.mxu0 0.0
        %544 = vmatprep.subr.mxu0 0.0
        %545 = vmatpush1.msra.mxu0 0.0
        %546 = vmatprep.subr.mxu0 0.0
        %547 = vmatpush1.msra.mxu0 0.0
        %548 = vmatprep.subr.mxu0 0.0
        %549 = vmatpush1.msra.mxu0 0.0
        %550 = vmatprep.subr.mxu0 0.0
        %551 = vmatpush1.msra.mxu0 0.0
        %552 = vmatprep.subr.mxu0 0.0
        %553 = vmatpush1.msra.mxu0 0.0
        %554 = vmatprep.mubr.f32.mxu0 0.0
        %555 = vmatmul.mubr.f32.gmra.mrb[0].mxu0 %v451
        %v556 = vpop.f32.mrb[0].mxu0
        %v557 = vadd.f32 %v488, %v556
        %v558 = vpop.f32.mrb[0].mxu0
        %559 = vmatprep.mubr.f32.mxu0 0.0
        %560 = vmatmul.mubr.f32.gmra.mrb[0].mxu0 %v452
        %v561 = vpop.f32.mrb[0].mxu0
        %v562 = vadd.f32 %v488, %v561
        %v563 = vpop.f32.mrb[0].mxu0
        %564 = vmatprep.mubr.f32.mxu0 0.0
        %565 = vmatmul.mubr.f32.gmra.mrb[0].mxu0 %v453
        %v566 = vpop.f32.mrb[0].mxu0
        %v567 = vadd.f32 %v488, %v566
        %v568 = vpop.f32.mrb[0].mxu0
        %569 = vmatprep.mubr.f32.mxu0 0.0
        %570 = vmatmul.mubr.f32.gmra.mrb[0].mxu0 %v454
        %v571 = vpop.f32.mrb[0].mxu0
        %v572 = vadd.f32 %v488, %v571
        %v573 = vpop.f32.mrb[0].mxu0
        %574 = vmatprep.mubr.f32.mxu0 0.0
        %575 = vmatmul.mubr.f32.gmra.mrb[0].mxu0 %v455
        %v576 = vpop.f32.mrb[0].mxu0
        %v577 = vadd.f32 %v488, %v576
        %v578 = vpop.f32.mrb[0].mxu0
        %579 = vmatprep.mubr.f32.mxu0 0.0
        %580 = vmatmul.mubr.f32.gmra.mrb[0].mxu0 %v456
        %v581 = vpop.f32.mrb[0].mxu0
        %v582 = vadd.f32 %v488, %v581
        %v583 = vpop.f32.mrb[0].mxu0
        %584 = vmatprep.mubr.f32.mxu0 0.0
        %585 = vmatmul.mubr.f32.gmra.mrb[0].mxu0 %v457
        %v586 = vpop.f32.mrb[0].mxu0
        %v587 = vadd.f32 %v488, %v586
        %v588 = vpop.f32.mrb[0].mxu0
        %589 = vmatprep.mubr.f32.mxu0 0.0
        %590 = vmatmul.mubr.f32.gmra.mrb[0].mxu0 %v458
        %v591 = vpop.f32.mrb[0].mxu0
        %v592 = vadd.f32 %v488, %v591
        %v593 = vpop.f32.mrb[0].mxu0
        %594 = vmatprep.mubr.f32.mxu0 0.0
        %595 = vmatmul.mubr.f32.gmra.mrb[0].mxu0 %v459
        %v596 = vpop.f32.mrb[0].mxu0
        %v597 = vadd.f32 %v488, %v596
        %v598 = vpop.f32.mrb[0].mxu0
        %599 = vmatprep.mubr.f32.mxu0 0.0
        %600 = vmatmul.mubr.f32.gmra.mrb[0].mxu0 %v460
        %v601 = vpop.f32.mrb[0].mxu0
        %v602 = vadd.f32 %v488, %v601
        %v603 = vpop.f32.mrb[0].mxu0
        %604 = vmatprep.mubr.f32.mxu0 0.0
        %605 = vmatmul.mubr.f32.gmra.mrb[0].mxu0 %v461
        %v606 = vpop.f32.mrb[0].mxu0
        %v607 = vadd.f32 %v488, %v606
        %v608 = vpop.f32.mrb[0].mxu0
        %609 = vmatprep.mubr.f32.mxu0 0.0
        %610 = vmatmul.mubr.f32.gmra.mrb[0].mxu0 %v462
        %v611 = vpop.f32.mrb[0].mxu0
        %v612 = vadd.f32 %v488, %v611
        %v613 = vpop.f32.mrb[0].mxu0
        %614 = vmatprep.mubr.f32.mxu0 0.0
        %615 = vmatmul.mubr.f32.gmra.mrb[0].mxu0 %v463
        %v616 = vpop.f32.mrb[0].mxu0
        %v617 = vadd.f32 %v488, %v616
        %v618 = vpop.f32.mrb[0].mxu0
        %619 = vmatprep.mubr.f32.mxu0 0.0
        %620 = vmatmul.mubr.f32.gmra.mrb[0].mxu0 %v464
        %v621 = vpop.f32.mrb[0].mxu0
        %v622 = vadd.f32 %v488, %v621
        %v623 = vpop.f32.mrb[0].mxu0
        %624 = vmatprep.mubr.f32.mxu0 0.0
        %625 = vmatmul.mubr.f32.gmra.mrb[0].mxu0 %v465
        %v626 = vpop.f32.mrb[0].mxu0
        %v627 = vadd.f32 %v488, %v626
        %v628 = vpop.f32.mrb[0].mxu0
        %629 = vmatprep.mubr.f32.mxu0 0.0
        %630 = vmatmul.mubr.f32.gmra.mrb[0].mxu0 %v466
        %v631 = vpop.f32.mrb[0].mxu0
        %v632 = vadd.f32 %v488, %v631
        %v633 = vpop.f32.mrb[0].mxu0
        %634 = vdwg.mxu0
        %v635 = vld [vmem:[%s3] sm:$0x1]
        %v636 = vld [vmem:[%s4] sm:$0x1]
        %637 = vadd.xlane.f32.xlu0 %v557
        %v638 = vpop.xlane.xlu0 %637
        %639 = vadd.xlane.f32.xlu0 %v562
        %v640 = vpop.xlane.xlu0 %639
        %641 = vadd.xlane.f32.xlu0 %v567
        %v642 = vpop.xlane.xlu0 %641
        %643 = vadd.xlane.f32.xlu0 %v572
        %v644 = vpop.xlane.xlu0 %643
        %645 = vadd.xlane.f32.xlu0 %v577
        %v646 = vpop.xlane.xlu0 %645
        %647 = vadd.xlane.f32.xlu0 %v582
        %v648 = vpop.xlane.xlu0 %647
        %649 = vadd.xlane.f32.xlu0 %v587
        %v650 = vpop.xlane.xlu0 %649
        %651 = vadd.xlane.f32.xlu0 %v592
        %v652 = vpop.xlane.xlu0 %651
        %653 = vadd.xlane.f32.xlu0 %v597
        %v654 = vpop.xlane.xlu0 %653
        %655 = vadd.xlane.f32.xlu0 %v602
        %v656 = vpop.xlane.xlu0 %655
        %657 = vadd.xlane.f32.xlu0 %v607
        %v658 = vpop.xlane.xlu0 %657
        %659 = vadd.xlane.f32.xlu0 %v612
        %v660 = vpop.xlane.xlu0 %659
        %661 = vadd.xlane.f32.xlu0 %v617
        %v662 = vpop.xlane.xlu0 %661
        %663 = vadd.xlane.f32.xlu0 %v622
        %v664 = vpop.xlane.xlu0 %663
        %665 = vadd.xlane.f32.xlu0 %v627
        %v666 = vpop.xlane.xlu0 %665
        %667 = vadd.xlane.f32.xlu0 %v632
        %v668 = vpop.xlane.xlu0 %667
        %v669 = vrcp.pop 128.0
        %v670 = vmul.f32 %v638, %v669
        %v671 = vmul.f32 %v640, %v669
        %v672 = vmul.f32 %v642, %v669
        %v673 = vmul.f32 %v644, %v669
        %v674 = vmul.f32 %v646, %v669
        %v675 = vmul.f32 %v648, %v669
        %v676 = vmul.f32 %v650, %v669
        %v677 = vmul.f32 %v652, %v669
        %v678 = vmul.f32 %v654, %v669
        %v679 = vmul.f32 %v656, %v669
        %v680 = vmul.f32 %v658, %v669
        %v681 = vmul.f32 %v660, %v669
        %v682 = vmul.f32 %v662, %v669
        %v683 = vmul.f32 %v664, %v669
        %v684 = vmul.f32 %v666, %v669
        %v685 = vmul.f32 %v668, %v669
        %v686 = vsub.f32 %v557, %v670
        %v687 = vsub.f32 %v562, %v671
        %v688 = vsub.f32 %v567, %v672
        %v689 = vsub.f32 %v572, %v673
        %v690 = vsub.f32 %v577, %v674
        %v691 = vsub.f32 %v582, %v675
        %v692 = vsub.f32 %v587, %v676
        %v693 = vsub.f32 %v592, %v677
        %v694 = vsub.f32 %v597, %v678
        %v695 = vsub.f32 %v602, %v679
        %v696 = vsub.f32 %v607, %v680
        %v697 = vsub.f32 %v612, %v681
        %v698 = vsub.f32 %v617, %v682
        %v699 = vsub.f32 %v622, %v683
        %v700 = vsub.f32 %v627, %v684
        %v701 = vsub.f32 %v632, %v685
        %v702 = vmul.f32 %v686, %v686
        %v703 = vmul.f32 %v687, %v687
        %v704 = vmul.f32 %v688, %v688
        %v705 = vmul.f32 %v689, %v689
        %v706 = vmul.f32 %v690, %v690
        %v707 = vmul.f32 %v691, %v691
        %v708 = vmul.f32 %v692, %v692
        %v709 = vmul.f32 %v693, %v693
        %v710 = vmul.f32 %v694, %v694
        %v711 = vmul.f32 %v695, %v695
        %v712 = vmul.f32 %v696, %v696
        %v713 = vmul.f32 %v697, %v697
        %v714 = vmul.f32 %v698, %v698
        %v715 = vmul.f32 %v699, %v699
        %v716 = vmul.f32 %v700, %v700
        %v717 = vmul.f32 %v701, %v701
        %718 = vadd.xlane.f32.xlu0 %v702
        %v719 = vpop.xlane.xlu0 %718
        %720 = vadd.xlane.f32.xlu0 %v703
        %v721 = vpop.xlane.xlu0 %720
        %722 = vadd.xlane.f32.xlu0 %v704
        %v723 = vpop.xlane.xlu0 %722
        %724 = vadd.xlane.f32.xlu0 %v705
        %v725 = vpop.xlane.xlu0 %724
        %726 = vadd.xlane.f32.xlu0 %v706
        %v727 = vpop.xlane.xlu0 %726
        %728 = vadd.xlane.f32.xlu0 %v707
        %v729 = vpop.xlane.xlu0 %728
        %730 = vadd.xlane.f32.xlu0 %v708
        %v731 = vpop.xlane.xlu0 %730
        %732 = vadd.xlane.f32.xlu0 %v709
        %v733 = vpop.xlane.xlu0 %732
        %734 = vadd.xlane.f32.xlu0 %v710
        %v735 = vpop.xlane.xlu0 %734
        %736 = vadd.xlane.f32.xlu0 %v711
        %v737 = vpop.xlane.xlu0 %736
        %738 = vadd.xlane.f32.xlu0 %v712
        %v739 = vpop.xlane.xlu0 %738
        %740 = vadd.xlane.f32.xlu0 %v713
        %v741 = vpop.xlane.xlu0 %740
        %742 = vadd.xlane.f32.xlu0 %v714
        %v743 = vpop.xlane.xlu0 %742
        %744 = vadd.xlane.f32.xlu0 %v715
        %v745 = vpop.xlane.xlu0 %744
        %746 = vadd.xlane.f32.xlu0 %v716
        %v747 = vpop.xlane.xlu0 %746
        %748 = vadd.xlane.f32.xlu0 %v717
        %v749 = vpop.xlane.xlu0 %748
        %v750 = vmul.f32 %v719, %v669
        %v751 = vmul.f32 %v721, %v669
        %v752 = vmul.f32 %v723, %v669
        %v753 = vmul.f32 %v725, %v669
        %v754 = vmul.f32 %v727, %v669
        %v755 = vmul.f32 %v729, %v669
        %v756 = vmul.f32 %v731, %v669
        %v757 = vmul.f32 %v733, %v669
        %v758 = vmul.f32 %v735, %v669
        %v759 = vmul.f32 %v737, %v669
        %v760 = vmul.f32 %v739, %v669
        %v761 = vmul.f32 %v741, %v669
        %v762 = vmul.f32 %v743, %v669
        %v763 = vmul.f32 %v745, %v669
        %v764 = vmul.f32 %v747, %v669
        %v765 = vmul.f32 %v749, %v669
        %v766 = vadd.f32 %v750, 1e-05
        %v767 = vadd.f32 %v751, 1e-05
        %v768 = vadd.f32 %v752, 1e-05
        %v769 = vadd.f32 %v753, 1e-05
        %v770 = vadd.f32 %v754, 1e-05
        %v771 = vadd.f32 %v755, 1e-05
        %v772 = vadd.f32 %v756, 1e-05
        %v773 = vadd.f32 %v757, 1e-05
        %v774 = vadd.f32 %v758, 1e-05
        %v775 = vadd.f32 %v759, 1e-05
        %v776 = vadd.f32 %v760, 1e-05
        %v777 = vadd.f32 %v761, 1e-05
        %v778 = vadd.f32 %v762, 1e-05
        %v779 = vadd.f32 %v763, 1e-05
        %v780 = vadd.f32 %v764, 1e-05
        %v781 = vadd.f32 %v765, 1e-05
        %v782 = vrsqrt.pop %v766
        %v783 = vrsqrt.pop %v767
        %v784 = vrsqrt.pop %v768
        %v785 = vrsqrt.pop %v769
        %v786 = vrsqrt.pop %v770
        %v787 = vrsqrt.pop %v771
        %v788 = vrsqrt.pop %v772
        %v789 = vrsqrt.pop %v773
        %v790 = vrsqrt.pop %v774
        %v791 = vrsqrt.pop %v775
        %v792 = vrsqrt.pop %v776
        %v793 = vrsqrt.pop %v777
        %v794 = vrsqrt.pop %v778
        %v795 = vrsqrt.pop %v779
        %v796 = vrsqrt.pop %v780
        %v797 = vrsqrt.pop %v781
        %v798 = vmul.f32 %v686, %v782
        %v799 = vmul.f32 %v687, %v783
        %v800 = vmul.f32 %v688, %v784
        %v801 = vmul.f32 %v689, %v785
        %v802 = vmul.f32 %v690, %v786
        %v803 = vmul.f32 %v691, %v787
        %v804 = vmul.f32 %v692, %v788
        %v805 = vmul.f32 %v693, %v789
        %v806 = vmul.f32 %v694, %v790
        %v807 = vmul.f32 %v695, %v791
        %v808 = vmul.f32 %v696, %v792
        %v809 = vmul.f32 %v697, %v793
        %v810 = vmul.f32 %v698, %v794
        %v811 = vmul.f32 %v699, %v795
        %v812 = vmul.f32 %v700, %v796
        %v813 = vmul.f32 %v701, %v797
        %v815 = vlaneseq
        %v816 = vshrl.u32 %v815, 7
        %v817 = vsub.s32 0, %v816
        %v818 = vrot.slane %v635, %v817
        %v820 = vmul.f32 %v798, %v818
        %v821 = vmul.f32 %v799, %v818
        %v822 = vmul.f32 %v800, %v818
        %v823 = vmul.f32 %v801, %v818
        %v824 = vmul.f32 %v802, %v818
        %v825 = vmul.f32 %v803, %v818
        %v826 = vmul.f32 %v804, %v818
        %v827 = vmul.f32 %v805, %v818
        %v828 = vmul.f32 %v806, %v818
        %v829 = vmul.f32 %v807, %v818
        %v830 = vmul.f32 %v808, %v818
        %v831 = vmul.f32 %v809, %v818
        %v832 = vmul.f32 %v810, %v818
        %v833 = vmul.f32 %v811, %v818
        %v834 = vmul.f32 %v812, %v818
        %v835 = vmul.f32 %v813, %v818
        %v837 = vlaneseq
        %v838 = vshrl.u32 %v837, 7
        %v839 = vsub.s32 0, %v838
        %v840 = vrot.slane %v636, %v839
        %v842 = vadd.f32 %v820, %v840
        %v843 = vadd.f32 %v821, %v840
        %v844 = vadd.f32 %v822, %v840
        %v845 = vadd.f32 %v823, %v840
        %v846 = vadd.f32 %v824, %v840
        %v847 = vadd.f32 %v825, %v840
        %v848 = vadd.f32 %v826, %v840
        %v849 = vadd.f32 %v827, %v840
        %v850 = vadd.f32 %v828, %v840
        %v851 = vadd.f32 %v829, %v840
        %v852 = vadd.f32 %v830, %v840
        %v853 = vadd.f32 %v831, %v840
        %v854 = vadd.f32 %v832, %v840
        %v855 = vadd.f32 %v833, %v840
        %v856 = vadd.f32 %v834, %v840
        %v857 = vadd.f32 %v835, %v840
        %v858 = vtanh.pop %v842
        %v859 = vtanh.pop %v843
        %v860 = vtanh.pop %v844
        %v861 = vtanh.pop %v845
        %v862 = vtanh.pop %v846
        %v863 = vtanh.pop %v847
        %v864 = vtanh.pop %v848
        %v865 = vtanh.pop %v849
        %v866 = vtanh.pop %v850
        %v867 = vtanh.pop %v851
        %v868 = vtanh.pop %v852
        %v869 = vtanh.pop %v853
        %v870 = vtanh.pop %v854
        %v871 = vtanh.pop %v855
        %v872 = vtanh.pop %v856
        %v873 = vtanh.pop %v857
        %v874 = vld [vmem:[%s5] sm:$0x1]
        %v875 = vld [vmem:[%s6] sm:$0x1]
        %876 = vadd.xlane.f32.xlu0 %v858
        %v877 = vpop.xlane.xlu0 %876
        %878 = vadd.xlane.f32.xlu0 %v859
        %v879 = vpop.xlane.xlu0 %878
        %880 = vadd.xlane.f32.xlu0 %v860
        %v881 = vpop.xlane.xlu0 %880
        %882 = vadd.xlane.f32.xlu0 %v861
        %v883 = vpop.xlane.xlu0 %882
        %884 = vadd.xlane.f32.xlu0 %v862
        %v885 = vpop.xlane.xlu0 %884
        %886 = vadd.xlane.f32.xlu0 %v863
        %v887 = vpop.xlane.xlu0 %886
        %888 = vadd.xlane.f32.xlu0 %v864
        %v889 = vpop.xlane.xlu0 %888
        %890 = vadd.xlane.f32.xlu0 %v865
        %v891 = vpop.xlane.xlu0 %890
        %892 = vadd.xlane.f32.xlu0 %v866
        %v893 = vpop.xlane.xlu0 %892
        %894 = vadd.xlane.f32.xlu0 %v867
        %v895 = vpop.xlane.xlu0 %894
        %896 = vadd.xlane.f32.xlu0 %v868
        %v897 = vpop.xlane.xlu0 %896
        %898 = vadd.xlane.f32.xlu0 %v869
        %v899 = vpop.xlane.xlu0 %898
        %900 = vadd.xlane.f32.xlu0 %v870
        %v901 = vpop.xlane.xlu0 %900
        %902 = vadd.xlane.f32.xlu0 %v871
        %v903 = vpop.xlane.xlu0 %902
        %904 = vadd.xlane.f32.xlu0 %v872
        %v905 = vpop.xlane.xlu0 %904
        %906 = vadd.xlane.f32.xlu0 %v873
        %v907 = vpop.xlane.xlu0 %906
        %v908 = vmul.f32 %v877, %v669
        %v909 = vmul.f32 %v879, %v669
        %v910 = vmul.f32 %v881, %v669
        %v911 = vmul.f32 %v883, %v669
        %v912 = vmul.f32 %v885, %v669
        %v913 = vmul.f32 %v887, %v669
        %v914 = vmul.f32 %v889, %v669
        %v915 = vmul.f32 %v891, %v669
        %v916 = vmul.f32 %v893, %v669
        %v917 = vmul.f32 %v895, %v669
        %v918 = vmul.f32 %v897, %v669
        %v919 = vmul.f32 %v899, %v669
        %v920 = vmul.f32 %v901, %v669
        %v921 = vmul.f32 %v903, %v669
        %v922 = vmul.f32 %v905, %v669
        %v923 = vmul.f32 %v907, %v669
        %v924 = vsub.f32 %v858, %v908
        %v925 = vsub.f32 %v859, %v909
        %v926 = vsub.f32 %v860, %v910
        %v927 = vsub.f32 %v861, %v911
        %v928 = vsub.f32 %v862, %v912
        %v929 = vsub.f32 %v863, %v913
        %v930 = vsub.f32 %v864, %v914
        %v931 = vsub.f32 %v865, %v915
        %v932 = vsub.f32 %v866, %v916
        %v933 = vsub.f32 %v867, %v917
        %v934 = vsub.f32 %v868, %v918
        %v935 = vsub.f32 %v869, %v919
        %v936 = vsub.f32 %v870, %v920
        %v937 = vsub.f32 %v871, %v921
        %v938 = vsub.f32 %v872, %v922
        %v939 = vsub.f32 %v873, %v923
        %v940 = vmul.f32 %v924, %v924
        %v941 = vmul.f32 %v925, %v925
        %v942 = vmul.f32 %v926, %v926
        %v943 = vmul.f32 %v927, %v927
        %v944 = vmul.f32 %v928, %v928
        %v945 = vmul.f32 %v929, %v929
        %v946 = vmul.f32 %v930, %v930
        %v947 = vmul.f32 %v931, %v931
        %v948 = vmul.f32 %v932, %v932
        %v949 = vmul.f32 %v933, %v933
        %v950 = vmul.f32 %v934, %v934
        %v951 = vmul.f32 %v935, %v935
        %v952 = vmul.f32 %v936, %v936
        %v953 = vmul.f32 %v937, %v937
        %v954 = vmul.f32 %v938, %v938
        %v955 = vmul.f32 %v939, %v939
        %956 = vadd.xlane.f32.xlu0 %v940
        %v957 = vpop.xlane.xlu0 %956
        %958 = vadd.xlane.f32.xlu0 %v941
        %v959 = vpop.xlane.xlu0 %958
        %960 = vadd.xlane.f32.xlu0 %v942
        %v961 = vpop.xlane.xlu0 %960
        %962 = vadd.xlane.f32.xlu0 %v943
        %v963 = vpop.xlane.xlu0 %962
        %964 = vadd.xlane.f32.xlu0 %v944
        %v965 = vpop.xlane.xlu0 %964
        %966 = vadd.xlane.f32.xlu0 %v945
        %v967 = vpop.xlane.xlu0 %966
        %968 = vadd.xlane.f32.xlu0 %v946
        %v969 = vpop.xlane.xlu0 %968
        %970 = vadd.xlane.f32.xlu0 %v947
        %v971 = vpop.xlane.xlu0 %970
        %972 = vadd.xlane.f32.xlu0 %v948
        %v973 = vpop.xlane.xlu0 %972
        %974 = vadd.xlane.f32.xlu0 %v949
        %v975 = vpop.xlane.xlu0 %974
        %976 = vadd.xlane.f32.xlu0 %v950
        %v977 = vpop.xlane.xlu0 %976
        %978 = vadd.xlane.f32.xlu0 %v951
        %v979 = vpop.xlane.xlu0 %978
        %980 = vadd.xlane.f32.xlu0 %v952
        %v981 = vpop.xlane.xlu0 %980
        %982 = vadd.xlane.f32.xlu0 %v953
        %v983 = vpop.xlane.xlu0 %982
        %984 = vadd.xlane.f32.xlu0 %v954
        %v985 = vpop.xlane.xlu0 %984
        %986 = vadd.xlane.f32.xlu0 %v955
        %v987 = vpop.xlane.xlu0 %986
        %v988 = vmul.f32 %v957, %v669
        %v989 = vmul.f32 %v959, %v669
        %v990 = vmul.f32 %v961, %v669
        %v991 = vmul.f32 %v963, %v669
        %v992 = vmul.f32 %v965, %v669
        %v993 = vmul.f32 %v967, %v669
        %v994 = vmul.f32 %v969, %v669
        %v995 = vmul.f32 %v971, %v669
        %v996 = vmul.f32 %v973, %v669
        %v997 = vmul.f32 %v975, %v669
        %v998 = vmul.f32 %v977, %v669
        %v999 = vmul.f32 %v979, %v669
        %v1000 = vmul.f32 %v981, %v669
        %v1001 = vmul.f32 %v983, %v669
        %v1002 = vmul.f32 %v985, %v669
        %v1003 = vmul.f32 %v987, %v669
        %v1004 = vadd.f32 %v988, 1e-05
        %v1005 = vadd.f32 %v989, 1e-05
        %v1006 = vadd.f32 %v990, 1e-05
        %v1007 = vadd.f32 %v991, 1e-05
        %v1008 = vadd.f32 %v992, 1e-05
        %v1009 = vadd.f32 %v993, 1e-05
        %v1010 = vadd.f32 %v994, 1e-05
        %v1011 = vadd.f32 %v995, 1e-05
        %v1012 = vadd.f32 %v996, 1e-05
        %v1013 = vadd.f32 %v997, 1e-05
        %v1014 = vadd.f32 %v998, 1e-05
        %v1015 = vadd.f32 %v999, 1e-05
        %v1016 = vadd.f32 %v1000, 1e-05
        %v1017 = vadd.f32 %v1001, 1e-05
        %v1018 = vadd.f32 %v1002, 1e-05
        %v1019 = vadd.f32 %v1003, 1e-05
        %v1020 = vrsqrt.pop %v1004
        %v1021 = vrsqrt.pop %v1005
        %v1022 = vrsqrt.pop %v1006
        %v1023 = vrsqrt.pop %v1007
        %v1024 = vrsqrt.pop %v1008
        %v1025 = vrsqrt.pop %v1009
        %v1026 = vrsqrt.pop %v1010
        %v1027 = vrsqrt.pop %v1011
        %v1028 = vrsqrt.pop %v1012
        %v1029 = vrsqrt.pop %v1013
        %v1030 = vrsqrt.pop %v1014
        %v1031 = vrsqrt.pop %v1015
        %v1032 = vrsqrt.pop %v1016
        %v1033 = vrsqrt.pop %v1017
        %v1034 = vrsqrt.pop %v1018
        %v1035 = vrsqrt.pop %v1019
        %v1036 = vmul.f32 %v924, %v1020
        %v1037 = vmul.f32 %v925, %v1021
        %v1038 = vmul.f32 %v926, %v1022
        %v1039 = vmul.f32 %v927, %v1023
        %v1040 = vmul.f32 %v928, %v1024
        %v1041 = vmul.f32 %v929, %v1025
        %v1042 = vmul.f32 %v930, %v1026
        %v1043 = vmul.f32 %v931, %v1027
        %v1044 = vmul.f32 %v932, %v1028
        %v1045 = vmul.f32 %v933, %v1029
        %v1046 = vmul.f32 %v934, %v1030
        %v1047 = vmul.f32 %v935, %v1031
        %v1048 = vmul.f32 %v936, %v1032
        %v1049 = vmul.f32 %v937, %v1033
        %v1050 = vmul.f32 %v938, %v1034
        %v1051 = vmul.f32 %v939, %v1035
        %v1053 = vlaneseq
        %v1054 = vshrl.u32 %v1053, 7
        %v1055 = vsub.s32 0, %v1054
        %v1056 = vrot.slane %v874, %v1055
        %v1058 = vmul.f32 %v1036, %v1056
        %v1059 = vmul.f32 %v1037, %v1056
        %v1060 = vmul.f32 %v1038, %v1056
        %v1061 = vmul.f32 %v1039, %v1056
        %v1062 = vmul.f32 %v1040, %v1056
        %v1063 = vmul.f32 %v1041, %v1056
        %v1064 = vmul.f32 %v1042, %v1056
        %v1065 = vmul.f32 %v1043, %v1056
        %v1066 = vmul.f32 %v1044, %v1056
        %v1067 = vmul.f32 %v1045, %v1056
        %v1068 = vmul.f32 %v1046, %v1056
        %v1069 = vmul.f32 %v1047, %v1056
        %v1070 = vmul.f32 %v1048, %v1056
        %v1071 = vmul.f32 %v1049, %v1056
        %v1072 = vmul.f32 %v1050, %v1056
        %v1073 = vmul.f32 %v1051, %v1056
        %v1075 = vlaneseq
        %v1076 = vshrl.u32 %v1075, 7
        %v1077 = vsub.s32 0, %v1076
        %v1078 = vrot.slane %v875, %v1077
        %v1080 = vadd.f32 %v1058, %v1078
        %v1081 = vadd.f32 %v1059, %v1078
        %v1082 = vadd.f32 %v1060, %v1078
        %v1083 = vadd.f32 %v1061, %v1078
        %v1084 = vadd.f32 %v1062, %v1078
        %v1085 = vadd.f32 %v1063, %v1078
        %v1086 = vadd.f32 %v1064, %v1078
        %v1087 = vadd.f32 %v1065, %v1078
        %v1088 = vadd.f32 %v1066, %v1078
        %v1089 = vadd.f32 %v1067, %v1078
        %v1090 = vadd.f32 %v1068, %v1078
        %v1091 = vadd.f32 %v1069, %v1078
        %v1092 = vadd.f32 %v1070, %v1078
        %v1093 = vadd.f32 %v1071, %v1078
        %v1094 = vadd.f32 %v1072, %v1078
        %v1095 = vadd.f32 %v1073, %v1078
        %v1096 = vld [vmem:[#allocation7] sm:$0xff]
        %v1097 = vld [vmem:[#allocation7 + $0x8] sm:$0xff]
        %v1098 = vld [vmem:[#allocation7 + $0x10] sm:$0xff]
        %v1099 = vld [vmem:[#allocation7 + $0x18] sm:$0xff]
        %v1100 = vld [vmem:[#allocation7 + $0x20] sm:$0xff]
        %v1101 = vld [vmem:[#allocation7 + $0x28] sm:$0xff]
        %v1102 = vld [vmem:[#allocation7 + $0x30] sm:$0xff]
        %v1103 = vld [vmem:[#allocation7 + $0x38] sm:$0xff]
        %v1104 = vld [vmem:[#allocation7 + $0x40] sm:$0xff]
        %v1105 = vld [vmem:[#allocation7 + $0x48] sm:$0xff]
        %v1106 = vld [vmem:[#allocation7 + $0x50] sm:$0xff]
        %v1107 = vld [vmem:[#allocation7 + $0x58] sm:$0xff]
        %v1108 = vld [vmem:[#allocation7 + $0x60] sm:$0xff]
        %v1109 = vld [vmem:[#allocation7 + $0x68] sm:$0xff]
        %v1110 = vld [vmem:[#allocation7 + $0x70] sm:$0xff]
        %v1111 = vld [vmem:[#allocation7 + $0x78] sm:$0xff]
        %v1112 = vld [vmem:[%s8] sm:$0x1]
        %v1114 = vlaneseq
        %v1115 = vshrl.u32 %v1114, 7
        %v1116 = vsub.s32 0, %v1115
        %v1117 = vrot.slane %v1112, %v1116
        %1119 = vmatprep.subr.mxu0 0.0
        %1120 = vmatpush1.msra.mxu0 %v1096
        %1121 = vmatprep.subr.mxu0 0.0
        %1122 = vmatpush1.msra.mxu0 %v1097
        %1123 = vmatprep.subr.mxu0 0.0
        %1124 = vmatpush1.msra.mxu0 %v1098
        %1125 = vmatprep.subr.mxu0 0.0
        %1126 = vmatpush1.msra.mxu0 %v1099
        %1127 = vmatprep.subr.mxu0 0.0
        %1128 = vmatpush1.msra.mxu0 %v1100
        %1129 = vmatprep.subr.mxu0 0.0
        %1130 = vmatpush1.msra.mxu0 %v1101
        %1131 = vmatprep.subr.mxu0 0.0
        %1132 = vmatpush1.msra.mxu0 %v1102
        %1133 = vmatprep.subr.mxu0 0.0
        %1134 = vmatpush1.msra.mxu0 %v1103
        %1135 = vmatprep.subr.mxu0 0.0
        %1136 = vmatpush1.msra.mxu0 %v1104
        %1137 = vmatprep.subr.mxu0 0.0
        %1138 = vmatpush1.msra.mxu0 %v1105
        %1139 = vmatprep.subr.mxu0 0.0
        %1140 = vmatpush1.msra.mxu0 %v1106
        %1141 = vmatprep.subr.mxu0 0.0
        %1142 = vmatpush1.msra.mxu0 %v1107
        %1143 = vmatprep.subr.mxu0 0.0
        %1144 = vmatpush1.msra.mxu0 %v1108
        %1145 = vmatprep.subr.mxu0 0.0
        %1146 = vmatpush1.msra.mxu0 %v1109
        %1147 = vmatprep.subr.mxu0 0.0
        %1148 = vmatpush1.msra.mxu0 %v1110
        %1149 = vmatprep.subr.mxu0 0.0
        %1150 = vmatpush1.msra.mxu0 %v1111
        %1151 = vmatprep.subr.mxu0 0.0
        %1152 = vmatpush1.msra.mxu0 0.0
        %1153 = vmatprep.subr.mxu0 0.0
        %1154 = vmatpush1.msra.mxu0 0.0
        %1155 = vmatprep.subr.mxu0 0.0
        %1156 = vmatpush1.msra.mxu0 0.0
        %1157 = vmatprep.subr.mxu0 0.0
        %1158 = vmatpush1.msra.mxu0 0.0
        %1159 = vmatprep.subr.mxu0 0.0
        %1160 = vmatpush1.msra.mxu0 0.0
        %1161 = vmatprep.subr.mxu0 0.0
        %1162 = vmatpush1.msra.mxu0 0.0
        %1163 = vmatprep.subr.mxu0 0.0
        %1164 = vmatpush1.msra.mxu0 0.0
        %1165 = vmatprep.subr.mxu0 0.0
        %1166 = vmatpush1.msra.mxu0 0.0
        %1167 = vmatprep.subr.mxu0 0.0
        %1168 = vmatpush1.msra.mxu0 0.0
        %1169 = vmatprep.subr.mxu0 0.0
        %1170 = vmatpush1.msra.mxu0 0.0
        %1171 = vmatprep.subr.mxu0 0.0
        %1172 = vmatpush1.msra.mxu0 0.0
        %1173 = vmatprep.subr.mxu0 0.0
        %1174 = vmatpush1.msra.mxu0 0.0
        %1175 = vmatprep.subr.mxu0 0.0
        %1176 = vmatpush1.msra.mxu0 0.0
        %1177 = vmatprep.subr.mxu0 0.0
        %1178 = vmatpush1.msra.mxu0 0.0
        %1179 = vmatprep.subr.mxu0 0.0
        %1180 = vmatpush1.msra.mxu0 0.0
        %1181 = vmatprep.subr.mxu0 0.0
        %1182 = vmatpush1.msra.mxu0 0.0
        %1183 = vmatprep.mubr.f32.mxu0 0.0
        %1184 = vmatmul.mubr.f32.gmra.mrb[0].mxu0 %v1080
        %v1185 = vpop.f32.mrb[0].mxu0
        %v1186 = vadd.f32 %v1117, %v1185
        %v1187 = vpop.f32.mrb[0].mxu0
        %1188 = vmatprep.mubr.f32.mxu0 0.0
        %1189 = vmatmul.mubr.f32.gmra.mrb[0].mxu0 %v1081
        %v1190 = vpop.f32.mrb[0].mxu0
        %v1191 = vadd.f32 %v1117, %v1190
        %v1192 = vpop.f32.mrb[0].mxu0
        %1193 = vmatprep.mubr.f32.mxu0 0.0
        %1194 = vmatmul.mubr.f32.gmra.mrb[0].mxu0 %v1082
        %v1195 = vpop.f32.mrb[0].mxu0
        %v1196 = vadd.f32 %v1117, %v1195
        %v1197 = vpop.f32.mrb[0].mxu0
        %1198 = vmatprep.mubr.f32.mxu0 0.0
        %1199 = vmatmul.mubr.f32.gmra.mrb[0].mxu0 %v1083
        %v1200 = vpop.f32.mrb[0].mxu0
        %v1201 = vadd.f32 %v1117, %v1200
        %v1202 = vpop.f32.mrb[0].mxu0
        %1203 = vmatprep.mubr.f32.mxu0 0.0
        %1204 = vmatmul.mubr.f32.gmra.mrb[0].mxu0 %v1084
        %v1205 = vpop.f32.mrb[0].mxu0
        %v1206 = vadd.f32 %v1117, %v1205
        %v1207 = vpop.f32.mrb[0].mxu0
        %1208 = vmatprep.mubr.f32.mxu0 0.0
        %1209 = vmatmul.mubr.f32.gmra.mrb[0].mxu0 %v1085
        %v1210 = vpop.f32.mrb[0].mxu0
        %v1211 = vadd.f32 %v1117, %v1210
        %v1212 = vpop.f32.mrb[0].mxu0
        %1213 = vmatprep.mubr.f32.mxu0 0.0
        %1214 = vmatmul.mubr.f32.gmra.mrb[0].mxu0 %v1086
        %v1215 = vpop.f32.mrb[0].mxu0
        %v1216 = vadd.f32 %v1117, %v1215
        %v1217 = vpop.f32.mrb[0].mxu0
        %1218 = vmatprep.mubr.f32.mxu0 0.0
        %1219 = vmatmul.mubr.f32.gmra.mrb[0].mxu0 %v1087
        %v1220 = vpop.f32.mrb[0].mxu0
        %v1221 = vadd.f32 %v1117, %v1220
        %v1222 = vpop.f32.mrb[0].mxu0
        %1223 = vmatprep.mubr.f32.mxu0 0.0
        %1224 = vmatmul.mubr.f32.gmra.mrb[0].mxu0 %v1088
        %v1225 = vpop.f32.mrb[0].mxu0
        %v1226 = vadd.f32 %v1117, %v1225
        %v1227 = vpop.f32.mrb[0].mxu0
        %1228 = vmatprep.mubr.f32.mxu0 0.0
        %1229 = vmatmul.mubr.f32.gmra.mrb[0].mxu0 %v1089
        %v1230 = vpop.f32.mrb[0].mxu0
        %v1231 = vadd.f32 %v1117, %v1230
        %v1232 = vpop.f32.mrb[0].mxu0
        %1233 = vmatprep.mubr.f32.mxu0 0.0
        %1234 = vmatmul.mubr.f32.gmra.mrb[0].mxu0 %v1090
        %v1235 = vpop.f32.mrb[0].mxu0
        %v1236 = vadd.f32 %v1117, %v1235
        %v1237 = vpop.f32.mrb[0].mxu0
        %1238 = vmatprep.mubr.f32.mxu0 0.0
        %1239 = vmatmul.mubr.f32.gmra.mrb[0].mxu0 %v1091
        %v1240 = vpop.f32.mrb[0].mxu0
        %v1241 = vadd.f32 %v1117, %v1240
        %v1242 = vpop.f32.mrb[0].mxu0
        %1243 = vmatprep.mubr.f32.mxu0 0.0
        %1244 = vmatmul.mubr.f32.gmra.mrb[0].mxu0 %v1092
        %v1245 = vpop.f32.mrb[0].mxu0
        %v1246 = vadd.f32 %v1117, %v1245
        %v1247 = vpop.f32.mrb[0].mxu0
        %1248 = vmatprep.mubr.f32.mxu0 0.0
        %1249 = vmatmul.mubr.f32.gmra.mrb[0].mxu0 %v1093
        %v1250 = vpop.f32.mrb[0].mxu0
        %v1251 = vadd.f32 %v1117, %v1250
        %v1252 = vpop.f32.mrb[0].mxu0
        %1253 = vmatprep.mubr.f32.mxu0 0.0
        %1254 = vmatmul.mubr.f32.gmra.mrb[0].mxu0 %v1094
        %v1255 = vpop.f32.mrb[0].mxu0
        %v1256 = vadd.f32 %v1117, %v1255
        %v1257 = vpop.f32.mrb[0].mxu0
        %1258 = vmatprep.mubr.f32.mxu0 0.0
        %1259 = vmatmul.mubr.f32.gmra.mrb[0].mxu0 %v1095
        %v1260 = vpop.f32.mrb[0].mxu0
        %v1261 = vadd.f32 %v1117, %v1260
        %v1262 = vpop.f32.mrb[0].mxu0
        %1263 = vdwg.mxu0
        %v1264 = vmax.f32 %v1186, 0.0
        %v1265 = vmax.f32 %v1191, 0.0
        %v1266 = vmax.f32 %v1196, 0.0
        %v1267 = vmax.f32 %v1201, 0.0
        %v1268 = vmax.f32 %v1206, 0.0
        %v1269 = vmax.f32 %v1211, 0.0
        %v1270 = vmax.f32 %v1216, 0.0
        %v1271 = vmax.f32 %v1221, 0.0
        %v1272 = vmax.f32 %v1226, 0.0
        %v1273 = vmax.f32 %v1231, 0.0
        %v1274 = vmax.f32 %v1236, 0.0
        %v1275 = vmax.f32 %v1241, 0.0
        %v1276 = vmax.f32 %v1246, 0.0
        %v1277 = vmax.f32 %v1251, 0.0
        %v1278 = vmax.f32 %v1256, 0.0
        %v1279 = vmax.f32 %v1261, 0.0
        %v1280 = vld [vmem:[#allocation8] sm:$0xff]
        %v1281 = vld [vmem:[#allocation8 + $0x8] sm:$0xff]
        %v1282 = vld [vmem:[#allocation8 + $0x10] sm:$0xff]
        %v1283 = vld [vmem:[#allocation8 + $0x18] sm:$0xff]
        %v1284 = vld [vmem:[#allocation8 + $0x20] sm:$0xff]
        %v1285 = vld [vmem:[#allocation8 + $0x28] sm:$0xff]
        %v1286 = vld [vmem:[#allocation8 + $0x30] sm:$0xff]
        %v1287 = vld [vmem:[#allocation8 + $0x38] sm:$0xff]
        %v1288 = vld [vmem:[#allocation8 + $0x40] sm:$0xff]
        %v1289 = vld [vmem:[#allocation8 + $0x48] sm:$0xff]
        %v1290 = vld [vmem:[#allocation8 + $0x50] sm:$0xff]
        %v1291 = vld [vmem:[#allocation8 + $0x58] sm:$0xff]
        %v1292 = vld [vmem:[#allocation8 + $0x60] sm:$0xff]
        %v1293 = vld [vmem:[#allocation8 + $0x68] sm:$0xff]
        %v1294 = vld [vmem:[#allocation8 + $0x70] sm:$0xff]
        %v1295 = vld [vmem:[#allocation8 + $0x78] sm:$0xff]
        %v1296 = vld [vmem:[%s10] sm:$0x1]
        %v1298 = vlaneseq
        %v1299 = vshrl.u32 %v1298, 7
        %v1300 = vsub.s32 0, %v1299
        %v1301 = vrot.slane %v1296, %v1300
        %1303 = vmatprep.subr.mxu0 0.0
        %1304 = vmatpush1.msra.mxu0 %v1280
        %1305 = vmatprep.subr.mxu0 0.0
        %1306 = vmatpush1.msra.mxu0 %v1281
        %1307 = vmatprep.subr.mxu0 0.0
        %1308 = vmatpush1.msra.mxu0 %v1282
        %1309 = vmatprep.subr.mxu0 0.0
        %1310 = vmatpush1.msra.mxu0 %v1283
        %1311 = vmatprep.subr.mxu0 0.0
        %1312 = vmatpush1.msra.mxu0 %v1284
        %1313 = vmatprep.subr.mxu0 0.0
        %1314 = vmatpush1.msra.mxu0 %v1285
        %1315 = vmatprep.subr.mxu0 0.0
        %1316 = vmatpush1.msra.mxu0 %v1286
        %1317 = vmatprep.subr.mxu0 0.0
        %1318 = vmatpush1.msra.mxu0 %v1287
        %1319 = vmatprep.subr.mxu0 0.0
        %1320 = vmatpush1.msra.mxu0 %v1288
        %1321 = vmatprep.subr.mxu0 0.0
        %1322 = vmatpush1.msra.mxu0 %v1289
        %1323 = vmatprep.subr.mxu0 0.0
        %1324 = vmatpush1.msra.mxu0 %v1290
        %1325 = vmatprep.subr.mxu0 0.0
        %1326 = vmatpush1.msra.mxu0 %v1291
        %1327 = vmatprep.subr.mxu0 0.0
        %1328 = vmatpush1.msra.mxu0 %v1292
        %1329 = vmatprep.subr.mxu0 0.0
        %1330 = vmatpush1.msra.mxu0 %v1293
        %1331 = vmatprep.subr.mxu0 0.0
        %1332 = vmatpush1.msra.mxu0 %v1294
        %1333 = vmatprep.subr.mxu0 0.0
        %1334 = vmatpush1.msra.mxu0 %v1295
        %1335 = vmatprep.subr.mxu0 0.0
        %1336 = vmatpush1.msra.mxu0 0.0
        %1337 = vmatprep.subr.mxu0 0.0
        %1338 = vmatpush1.msra.mxu0 0.0
        %1339 = vmatprep.subr.mxu0 0.0
        %1340 = vmatpush1.msra.mxu0 0.0
        %1341 = vmatprep.subr.mxu0 0.0
        %1342 = vmatpush1.msra.mxu0 0.0
        %1343 = vmatprep.subr.mxu0 0.0
        %1344 = vmatpush1.msra.mxu0 0.0
        %1345 = vmatprep.subr.mxu0 0.0
        %1346 = vmatpush1.msra.mxu0 0.0
        %1347 = vmatprep.subr.mxu0 0.0
        %1348 = vmatpush1.msra.mxu0 0.0
        %1349 = vmatprep.subr.mxu0 0.0
        %1350 = vmatpush1.msra.mxu0 0.0
        %1351 = vmatprep.subr.mxu0 0.0
        %1352 = vmatpush1.msra.mxu0 0.0
        %1353 = vmatprep.subr.mxu0 0.0
        %1354 = vmatpush1.msra.mxu0 0.0
        %1355 = vmatprep.subr.mxu0 0.0
        %1356 = vmatpush1.msra.mxu0 0.0
        %1357 = vmatprep.subr.mxu0 0.0
        %1358 = vmatpush1.msra.mxu0 0.0
        %1359 = vmatprep.subr.mxu0 0.0
        %1360 = vmatpush1.msra.mxu0 0.0
        %1361 = vmatprep.subr.mxu0 0.0
        %1362 = vmatpush1.msra.mxu0 0.0
        %1363 = vmatprep.subr.mxu0 0.0
        %1364 = vmatpush1.msra.mxu0 0.0
        %1365 = vmatprep.subr.mxu0 0.0
        %1366 = vmatpush1.msra.mxu0 0.0
        %1367 = vmatprep.mubr.f32.mxu0 0.0
        %1368 = vmatmul.mubr.f32.gmra.mrb[0].mxu0 %v1264
        %v1369 = vpop.f32.mrb[0].mxu0
        %v1370 = vadd.f32 %v1301, %v1369
        %v1371 = vpop.f32.mrb[0].mxu0
        %1372 = vmatprep.mubr.f32.mxu0 0.0
        %1373 = vmatmul.mubr.f32.gmra.mrb[0].mxu0 %v1265
        %v1374 = vpop.f32.mrb[0].mxu0
        %v1375 = vadd.f32 %v1301, %v1374
        %v1376 = vpop.f32.mrb[0].mxu0
        %1377 = vmatprep.mubr.f32.mxu0 0.0
        %1378 = vmatmul.mubr.f32.gmra.mrb[0].mxu0 %v1266
        %v1379 = vpop.f32.mrb[0].mxu0
        %v1380 = vadd.f32 %v1301, %v1379
        %v1381 = vpop.f32.mrb[0].mxu0
        %1382 = vmatprep.mubr.f32.mxu0 0.0
        %1383 = vmatmul.mubr.f32.gmra.mrb[0].mxu0 %v1267
        %v1384 = vpop.f32.mrb[0].mxu0
        %v1385 = vadd.f32 %v1301, %v1384
        %v1386 = vpop.f32.mrb[0].mxu0
        %1387 = vmatprep.mubr.f32.mxu0 0.0
        %1388 = vmatmul.mubr.f32.gmra.mrb[0].mxu0 %v1268
        %v1389 = vpop.f32.mrb[0].mxu0
        %v1390 = vadd.f32 %v1301, %v1389
        %v1391 = vpop.f32.mrb[0].mxu0
        %1392 = vmatprep.mubr.f32.mxu0 0.0
        %1393 = vmatmul.mubr.f32.gmra.mrb[0].mxu0 %v1269
        %v1394 = vpop.f32.mrb[0].mxu0
        %v1395 = vadd.f32 %v1301, %v1394
        %v1396 = vpop.f32.mrb[0].mxu0
        %1397 = vmatprep.mubr.f32.mxu0 0.0
        %1398 = vmatmul.mubr.f32.gmra.mrb[0].mxu0 %v1270
        %v1399 = vpop.f32.mrb[0].mxu0
        %v1400 = vadd.f32 %v1301, %v1399
        %v1401 = vpop.f32.mrb[0].mxu0
        %1402 = vmatprep.mubr.f32.mxu0 0.0
        %1403 = vmatmul.mubr.f32.gmra.mrb[0].mxu0 %v1271
        %v1404 = vpop.f32.mrb[0].mxu0
        %v1405 = vadd.f32 %v1301, %v1404
        %v1406 = vpop.f32.mrb[0].mxu0
        %1407 = vmatprep.mubr.f32.mxu0 0.0
        %1408 = vmatmul.mubr.f32.gmra.mrb[0].mxu0 %v1272
        %v1409 = vpop.f32.mrb[0].mxu0
        %v1410 = vadd.f32 %v1301, %v1409
        %v1411 = vpop.f32.mrb[0].mxu0
        %1412 = vmatprep.mubr.f32.mxu0 0.0
        %1413 = vmatmul.mubr.f32.gmra.mrb[0].mxu0 %v1273
        %v1414 = vpop.f32.mrb[0].mxu0
        %v1415 = vadd.f32 %v1301, %v1414
        %v1416 = vpop.f32.mrb[0].mxu0
        %1417 = vmatprep.mubr.f32.mxu0 0.0
        %1418 = vmatmul.mubr.f32.gmra.mrb[0].mxu0 %v1274
        %v1419 = vpop.f32.mrb[0].mxu0
        %v1420 = vadd.f32 %v1301, %v1419
        %v1421 = vpop.f32.mrb[0].mxu0
        %1422 = vmatprep.mubr.f32.mxu0 0.0
        %1423 = vmatmul.mubr.f32.gmra.mrb[0].mxu0 %v1275
        %v1424 = vpop.f32.mrb[0].mxu0
        %v1425 = vadd.f32 %v1301, %v1424
        %v1426 = vpop.f32.mrb[0].mxu0
        %1427 = vmatprep.mubr.f32.mxu0 0.0
        %1428 = vmatmul.mubr.f32.gmra.mrb[0].mxu0 %v1276
        %v1429 = vpop.f32.mrb[0].mxu0
        %v1430 = vadd.f32 %v1301, %v1429
        %v1431 = vpop.f32.mrb[0].mxu0
        %1432 = vmatprep.mubr.f32.mxu0 0.0
        %1433 = vmatmul.mubr.f32.gmra.mrb[0].mxu0 %v1277
        %v1434 = vpop.f32.mrb[0].mxu0
        %v1435 = vadd.f32 %v1301, %v1434
        %v1436 = vpop.f32.mrb[0].mxu0
        %1437 = vmatprep.mubr.f32.mxu0 0.0
        %1438 = vmatmul.mubr.f32.gmra.mrb[0].mxu0 %v1278
        %v1439 = vpop.f32.mrb[0].mxu0
        %v1440 = vadd.f32 %v1301, %v1439
        %v1441 = vpop.f32.mrb[0].mxu0
        %1442 = vmatprep.mubr.f32.mxu0 0.0
        %1443 = vmatmul.mubr.f32.gmra.mrb[0].mxu0 %v1279
        %v1444 = vpop.f32.mrb[0].mxu0
        %v1445 = vadd.f32 %v1301, %v1444
        %v1446 = vpop.f32.mrb[0].mxu0
        %1447 = vdwg.mxu0
        %v1448 = vadd.f32 %v1370, %v858
        %v1449 = vadd.f32 %v1375, %v859
        %v1450 = vadd.f32 %v1380, %v860
        %v1451 = vadd.f32 %v1385, %v861
        %v1452 = vadd.f32 %v1390, %v862
        %v1453 = vadd.f32 %v1395, %v863
        %v1454 = vadd.f32 %v1400, %v864
        %v1455 = vadd.f32 %v1405, %v865
        %v1456 = vadd.f32 %v1410, %v866
        %v1457 = vadd.f32 %v1415, %v867
        %v1458 = vadd.f32 %v1420, %v868
        %v1459 = vadd.f32 %v1425, %v869
        %v1460 = vadd.f32 %v1430, %v870
        %v1461 = vadd.f32 %v1435, %v871
        %v1462 = vadd.f32 %v1440, %v872
        %v1463 = vadd.f32 %v1445, %v873
        %s1464 = scalar_lea.vmem %s5, 1
        %v1465 = vld [vmem:[%s1464] sm:$0x1]
        %s1466 = scalar_lea.vmem %s6, 1
        %v1467 = vld [vmem:[%s1466] sm:$0x1]
        %1468 = vadd.xlane.f32.xlu0 %v1448
        %v1469 = vpop.xlane.xlu0 %1468
        %1470 = vadd.xlane.f32.xlu0 %v1449
        %v1471 = vpop.xlane.xlu0 %1470
        %1472 = vadd.xlane.f32.xlu0 %v1450
        %v1473 = vpop.xlane.xlu0 %1472
        %1474 = vadd.xlane.f32.xlu0 %v1451
        %v1475 = vpop.xlane.xlu0 %1474
        %1476 = vadd.xlane.f32.xlu0 %v1452
        %v1477 = vpop.xlane.xlu0 %1476
        %1478 = vadd.xlane.f32.xlu0 %v1453
        %v1479 = vpop.xlane.xlu0 %1478
        %1480 = vadd.xlane.f32.xlu0 %v1454
        %v1481 = vpop.xlane.xlu0 %1480
        %1482 = vadd.xlane.f32.xlu0 %v1455
        %v1483 = vpop.xlane.xlu0 %1482
        %1484 = vadd.xlane.f32.xlu0 %v1456
        %v1485 = vpop.xlane.xlu0 %1484
        %1486 = vadd.xlane.f32.xlu0 %v1457
        %v1487 = vpop.xlane.xlu0 %1486
        %1488 = vadd.xlane.f32.xlu0 %v1458
        %v1489 = vpop.xlane.xlu0 %1488
        %1490 = vadd.xlane.f32.xlu0 %v1459
        %v1491 = vpop.xlane.xlu0 %1490
        %1492 = vadd.xlane.f32.xlu0 %v1460
        %v1493 = vpop.xlane.xlu0 %1492
        %1494 = vadd.xlane.f32.xlu0 %v1461
        %v1495 = vpop.xlane.xlu0 %1494
        %1496 = vadd.xlane.f32.xlu0 %v1462
        %v1497 = vpop.xlane.xlu0 %1496
        %1498 = vadd.xlane.f32.xlu0 %v1463
        %v1499 = vpop.xlane.xlu0 %1498
        %v1500 = vmul.f32 %v1469, %v669
        %v1501 = vmul.f32 %v1471, %v669
        %v1502 = vmul.f32 %v1473, %v669
        %v1503 = vmul.f32 %v1475, %v669
        %v1504 = vmul.f32 %v1477, %v669
        %v1505 = vmul.f32 %v1479, %v669
        %v1506 = vmul.f32 %v1481, %v669
        %v1507 = vmul.f32 %v1483, %v669
        %v1508 = vmul.f32 %v1485, %v669
        %v1509 = vmul.f32 %v1487, %v669
        %v1510 = vmul.f32 %v1489, %v669
        %v1511 = vmul.f32 %v1491, %v669
        %v1512 = vmul.f32 %v1493, %v669
        %v1513 = vmul.f32 %v1495, %v669
        %v1514 = vmul.f32 %v1497, %v669
        %v1515 = vmul.f32 %v1499, %v669
        %v1516 = vsub.f32 %v1448, %v1500
        %v1517 = vsub.f32 %v1449, %v1501
        %v1518 = vsub.f32 %v1450, %v1502
        %v1519 = vsub.f32 %v1451, %v1503
        %v1520 = vsub.f32 %v1452, %v1504
        %v1521 = vsub.f32 %v1453, %v1505
        %v1522 = vsub.f32 %v1454, %v1506
        %v1523 = vsub.f32 %v1455, %v1507
        %v1524 = vsub.f32 %v1456, %v1508
        %v1525 = vsub.f32 %v1457, %v1509
        %v1526 = vsub.f32 %v1458, %v1510
        %v1527 = vsub.f32 %v1459, %v1511
        %v1528 = vsub.f32 %v1460, %v1512
        %v1529 = vsub.f32 %v1461, %v1513
        %v1530 = vsub.f32 %v1462, %v1514
        %v1531 = vsub.f32 %v1463, %v1515
        %v1532 = vmul.f32 %v1516, %v1516
        %v1533 = vmul.f32 %v1517, %v1517
        %v1534 = vmul.f32 %v1518, %v1518
        %v1535 = vmul.f32 %v1519, %v1519
        %v1536 = vmul.f32 %v1520, %v1520
        %v1537 = vmul.f32 %v1521, %v1521
        %v1538 = vmul.f32 %v1522, %v1522
        %v1539 = vmul.f32 %v1523, %v1523
        %v1540 = vmul.f32 %v1524, %v1524
        %v1541 = vmul.f32 %v1525, %v1525
        %v1542 = vmul.f32 %v1526, %v1526
        %v1543 = vmul.f32 %v1527, %v1527
        %v1544 = vmul.f32 %v1528, %v1528
        %v1545 = vmul.f32 %v1529, %v1529
        %v1546 = vmul.f32 %v1530, %v1530
        %v1547 = vmul.f32 %v1531, %v1531
        %1548 = vadd.xlane.f32.xlu0 %v1532
        %v1549 = vpop.xlane.xlu0 %1548
        %1550 = vadd.xlane.f32.xlu0 %v1533
        %v1551 = vpop.xlane.xlu0 %1550
        %1552 = vadd.xlane.f32.xlu0 %v1534
        %v1553 = vpop.xlane.xlu0 %1552
        %1554 = vadd.xlane.f32.xlu0 %v1535
        %v1555 = vpop.xlane.xlu0 %1554
        %1556 = vadd.xlane.f32.xlu0 %v1536
        %v1557 = vpop.xlane.xlu0 %1556
        %1558 = vadd.xlane.f32.xlu0 %v1537
        %v1559 = vpop.xlane.xlu0 %1558
        %1560 = vadd.xlane.f32.xlu0 %v1538
        %v1561 = vpop.xlane.xlu0 %1560
        %1562 = vadd.xlane.f32.xlu0 %v1539
        %v1563 = vpop.xlane.xlu0 %1562
        %1564 = vadd.xlane.f32.xlu0 %v1540
        %v1565 = vpop.xlane.xlu0 %1564
        %1566 = vadd.xlane.f32.xlu0 %v1541
        %v1567 = vpop.xlane.xlu0 %1566
        %1568 = vadd.xlane.f32.xlu0 %v1542
        %v1569 = vpop.xlane.xlu0 %1568
        %1570 = vadd.xlane.f32.xlu0 %v1543
        %v1571 = vpop.xlane.xlu0 %1570
        %1572 = vadd.xlane.f32.xlu0 %v1544
        %v1573 = vpop.xlane.xlu0 %1572
        %1574 = vadd.xlane.f32.xlu0 %v1545
        %v1575 = vpop.xlane.xlu0 %1574
        %1576 = vadd.xlane.f32.xlu0 %v1546
        %v1577 = vpop.xlane.xlu0 %1576
        %1578 = vadd.xlane.f32.xlu0 %v1547
        %v1579 = vpop.xlane.xlu0 %1578
        %v1580 = vmul.f32 %v1549, %v669
        %v1581 = vmul.f32 %v1551, %v669
        %v1582 = vmul.f32 %v1553, %v669
        %v1583 = vmul.f32 %v1555, %v669
        %v1584 = vmul.f32 %v1557, %v669
        %v1585 = vmul.f32 %v1559, %v669
        %v1586 = vmul.f32 %v1561, %v669
        %v1587 = vmul.f32 %v1563, %v669
        %v1588 = vmul.f32 %v1565, %v669
        %v1589 = vmul.f32 %v1567, %v669
        %v1590 = vmul.f32 %v1569, %v669
        %v1591 = vmul.f32 %v1571, %v669
        %v1592 = vmul.f32 %v1573, %v669
        %v1593 = vmul.f32 %v1575, %v669
        %v1594 = vmul.f32 %v1577, %v669
        %v1595 = vmul.f32 %v1579, %v669
        %v1596 = vadd.f32 %v1580, 1e-05
        %v1597 = vadd.f32 %v1581, 1e-05
        %v1598 = vadd.f32 %v1582, 1e-05
        %v1599 = vadd.f32 %v1583, 1e-05
        %v1600 = vadd.f32 %v1584, 1e-05
        %v1601 = vadd.f32 %v1585, 1e-05
        %v1602 = vadd.f32 %v1586, 1e-05
        %v1603 = vadd.f32 %v1587, 1e-05
        %v1604 = vadd.f32 %v1588, 1e-05
        %v1605 = vadd.f32 %v1589, 1e-05
        %v1606 = vadd.f32 %v1590, 1e-05
        %v1607 = vadd.f32 %v1591, 1e-05
        %v1608 = vadd.f32 %v1592, 1e-05
        %v1609 = vadd.f32 %v1593, 1e-05
        %v1610 = vadd.f32 %v1594, 1e-05
        %v1611 = vadd.f32 %v1595, 1e-05
        %v1612 = vrsqrt.pop %v1596
        %v1613 = vrsqrt.pop %v1597
        %v1614 = vrsqrt.pop %v1598
        %v1615 = vrsqrt.pop %v1599
        %v1616 = vrsqrt.pop %v1600
        %v1617 = vrsqrt.pop %v1601
        %v1618 = vrsqrt.pop %v1602
        %v1619 = vrsqrt.pop %v1603
        %v1620 = vrsqrt.pop %v1604
        %v1621 = vrsqrt.pop %v1605
        %v1622 = vrsqrt.pop %v1606
        %v1623 = vrsqrt.pop %v1607
        %v1624 = vrsqrt.pop %v1608
        %v1625 = vrsqrt.pop %v1609
        %v1626 = vrsqrt.pop %v1610
        %v1627 = vrsqrt.pop %v1611
        %v1628 = vmul.f32 %v1516, %v1612
        %v1629 = vmul.f32 %v1517, %v1613
        %v1630 = vmul.f32 %v1518, %v1614
        %v1631 = vmul.f32 %v1519, %v1615
        %v1632 = vmul.f32 %v1520, %v1616
        %v1633 = vmul.f32 %v1521, %v1617
        %v1634 = vmul.f32 %v1522, %v1618
        %v1635 = vmul.f32 %v1523, %v1619
        %v1636 = vmul.f32 %v1524, %v1620
        %v1637 = vmul.f32 %v1525, %v1621
        %v1638 = vmul.f32 %v1526, %v1622
        %v1639 = vmul.f32 %v1527, %v1623
        %v1640 = vmul.f32 %v1528, %v1624
        %v1641 = vmul.f32 %v1529, %v1625
        %v1642 = vmul.f32 %v1530, %v1626
        %v1643 = vmul.f32 %v1531, %v1627
        %v1645 = vlaneseq
        %v1646 = vshrl.u32 %v1645, 7
        %v1647 = vsub.s32 0, %v1646
        %v1648 = vrot.slane %v1465, %v1647
        %v1650 = vmul.f32 %v1628, %v1648
        %v1651 = vmul.f32 %v1629, %v1648
        %v1652 = vmul.f32 %v1630, %v1648
        %v1653 = vmul.f32 %v1631, %v1648
        %v1654 = vmul.f32 %v1632, %v1648
        %v1655 = vmul.f32 %v1633, %v1648
        %v1656 = vmul.f32 %v1634, %v1648
        %v1657 = vmul.f32 %v1635, %v1648
        %v1658 = vmul.f32 %v1636, %v1648
        %v1659 = vmul.f32 %v1637, %v1648
        %v1660 = vmul.f32 %v1638, %v1648
        %v1661 = vmul.f32 %v1639, %v1648
        %v1662 = vmul.f32 %v1640, %v1648
        %v1663 = vmul.f32 %v1641, %v1648
        %v1664 = vmul.f32 %v1642, %v1648
        %v1665 = vmul.f32 %v1643, %v1648
        %v1667 = vlaneseq
        %v1668 = vshrl.u32 %v1667, 7
        %v1669 = vsub.s32 0, %v1668
        %v1670 = vrot.slane %v1467, %v1669
        %v1672 = vadd.f32 %v1650, %v1670
        %v1673 = vadd.f32 %v1651, %v1670
        %v1674 = vadd.f32 %v1652, %v1670
        %v1675 = vadd.f32 %v1653, %v1670
        %v1676 = vadd.f32 %v1654, %v1670
        %v1677 = vadd.f32 %v1655, %v1670
        %v1678 = vadd.f32 %v1656, %v1670
        %v1679 = vadd.f32 %v1657, %v1670
        %v1680 = vadd.f32 %v1658, %v1670
        %v1681 = vadd.f32 %v1659, %v1670
        %v1682 = vadd.f32 %v1660, %v1670
        %v1683 = vadd.f32 %v1661, %v1670
        %v1684 = vadd.f32 %v1662, %v1670
        %v1685 = vadd.f32 %v1663, %v1670
        %v1686 = vadd.f32 %v1664, %v1670
        %v1687 = vadd.f32 %v1665, %v1670
        %s1688 = scalar_lea.vmem [#allocation7], 128
        %v1689 = vld [vmem:[%s1688] sm:$0xff]
        %v1690 = vld [vmem:[%s1688 + $0x8] sm:$0xff]
        %v1691 = vld [vmem:[%s1688 + $0x10] sm:$0xff]
        %v1692 = vld [vmem:[%s1688 + $0x18] sm:$0xff]
        %v1693 = vld [vmem:[%s1688 + $0x20] sm:$0xff]
        %v1694 = vld [vmem:[%s1688 + $0x28] sm:$0xff]
        %v1695 = vld [vmem:[%s1688 + $0x30] sm:$0xff]
        %v1696 = vld [vmem:[%s1688 + $0x38] sm:$0xff]
        %v1697 = vld [vmem:[%s1688 + $0x40] sm:$0xff]
        %v1698 = vld [vmem:[%s1688 + $0x48] sm:$0xff]
        %v1699 = vld [vmem:[%s1688 + $0x50] sm:$0xff]
        %v1700 = vld [vmem:[%s1688 + $0x58] sm:$0xff]
        %v1701 = vld [vmem:[%s1688 + $0x60] sm:$0xff]
        %v1702 = vld [vmem:[%s1688 + $0x68] sm:$0xff]
        %v1703 = vld [vmem:[%s1688 + $0x70] sm:$0xff]
        %v1704 = vld [vmem:[%s1688 + $0x78] sm:$0xff]
        %s1705 = scalar_lea.vmem %s8, 1
        %v1706 = vld [vmem:[%s1705] sm:$0x1]
        %v1708 = vlaneseq
        %v1709 = vshrl.u32 %v1708, 7
        %v1710 = vsub.s32 0, %v1709
        %v1711 = vrot.slane %v1706, %v1710
        %1713 = vmatprep.subr.mxu0 0.0
        %1714 = vmatpush1.msra.mxu0 %v1689
        %1715 = vmatprep.subr.mxu0 0.0
        %1716 = vmatpush1.msra.mxu0 %v1690
        %1717 = vmatprep.subr.mxu0 0.0
        %1718 = vmatpush1.msra.mxu0 %v1691
        %1719 = vmatprep.subr.mxu0 0.0
        %1720 = vmatpush1.msra.mxu0 %v1692
        %1721 = vmatprep.subr.mxu0 0.0
        %1722 = vmatpush1.msra.mxu0 %v1693
        %1723 = vmatprep.subr.mxu0 0.0
        %1724 = vmatpush1.msra.mxu0 %v1694
        %1725 = vmatprep.subr.mxu0 0.0
        %1726 = vmatpush1.msra.mxu0 %v1695
        %1727 = vmatprep.subr.mxu0 0.0
        %1728 = vmatpush1.msra.mxu0 %v1696
        %1729 = vmatprep.subr.mxu0 0.0
        %1730 = vmatpush1.msra.mxu0 %v1697
        %1731 = vmatprep.subr.mxu0 0.0
        %1732 = vmatpush1.msra.mxu0 %v1698
        %1733 = vmatprep.subr.mxu0 0.0
        %1734 = vmatpush1.msra.mxu0 %v1699
        %1735 = vmatprep.subr.mxu0 0.0
        %1736 = vmatpush1.msra.mxu0 %v1700
        %1737 = vmatprep.subr.mxu0 0.0
        %1738 = vmatpush1.msra.mxu0 %v1701
        %1739 = vmatprep.subr.mxu0 0.0
        %1740 = vmatpush1.msra.mxu0 %v1702
        %1741 = vmatprep.subr.mxu0 0.0
        %1742 = vmatpush1.msra.mxu0 %v1703
        %1743 = vmatprep.subr.mxu0 0.0
        %1744 = vmatpush1.msra.mxu0 %v1704
        %1745 = vmatprep.subr.mxu0 0.0
        %1746 = vmatpush1.msra.mxu0 0.0
        %1747 = vmatprep.subr.mxu0 0.0
        %1748 = vmatpush1.msra.mxu0 0.0
        %1749 = vmatprep.subr.mxu0 0.0
        %1750 = vmatpush1.msra.mxu0 0.0
        %1751 = vmatprep.subr.mxu0 0.0
        %1752 = vmatpush1.msra.mxu0 0.0
        %1753 = vmatprep.subr.mxu0 0.0
        %1754 = vmatpush1.msra.mxu0 0.0
        %1755 = vmatprep.subr.mxu0 0.0
        %1756 = vmatpush1.msra.mxu0 0.0
        %1757 = vmatprep.subr.mxu0 0.0
        %1758 = vmatpush1.msra.mxu0 0.0
        %1759 = vmatprep.subr.mxu0 0.0
        %1760 = vmatpush1.msra.mxu0 0.0
        %1761 = vmatprep.subr.mxu0 0.0
        %1762 = vmatpush1.msra.mxu0 0.0
        %1763 = vmatprep.subr.mxu0 0.0
        %1764 = vmatpush1.msra.mxu0 0.0
        %1765 = vmatprep.subr.mxu0 0.0
        %1766 = vmatpush1.msra.mxu0 0.0
        %1767 = vmatprep.subr.mxu0 0.0
        %1768 = vmatpush1.msra.mxu0 0.0
        %1769 = vmatprep.subr.mxu0 0.0
        %1770 = vmatpush1.msra.mxu0 0.0
        %1771 = vmatprep.subr.mxu0 0.0
        %1772 = vmatpush1.msra.mxu0 0.0
        %1773 = vmatprep.subr.mxu0 0.0
        %1774 = vmatpush1.msra.mxu0 0.0
        %1775 = vmatprep.subr.mxu0 0.0
        %1776 = vmatpush1.msra.mxu0 0.0
        %1777 = vmatprep.mubr.f32.mxu0 0.0
        %1778 = vmatmul.mubr.f32.gmra.mrb[0].mxu0 %v1672
        %v1779 = vpop.f32.mrb[0].mxu0
        %v1780 = vadd.f32 %v1711, %v1779
        %v1781 = vpop.f32.mrb[0].mxu0
        %1782 = vmatprep.mubr.f32.mxu0 0.0
        %1783 = vmatmul.mubr.f32.gmra.mrb[0].mxu0 %v1673
        %v1784 = vpop.f32.mrb[0].mxu0
        %v1785 = vadd.f32 %v1711, %v1784
        %v1786 = vpop.f32.mrb[0].mxu0
        %1787 = vmatprep.mubr.f32.mxu0 0.0
        %1788 = vmatmul.mubr.f32.gmra.mrb[0].mxu0 %v1674
        %v1789 = vpop.f32.mrb[0].mxu0
        %v1790 = vadd.f32 %v1711, %v1789
        %v1791 = vpop.f32.mrb[0].mxu0
        %1792 = vmatprep.mubr.f32.mxu0 0.0
        %1793 = vmatmul.mubr.f32.gmra.mrb[0].mxu0 %v1675
        %v1794 = vpop.f32.mrb[0].mxu0
        %v1795 = vadd.f32 %v1711, %v1794
        %v1796 = vpop.f32.mrb[0].mxu0
        %1797 = vmatprep.mubr.f32.mxu0 0.0
        %1798 = vmatmul.mubr.f32.gmra.mrb[0].mxu0 %v1676
        %v1799 = vpop.f32.mrb[0].mxu0
        %v1800 = vadd.f32 %v1711, %v1799
        %v1801 = vpop.f32.mrb[0].mxu0
        %1802 = vmatprep.mubr.f32.mxu0 0.0
        %1803 = vmatmul.mubr.f32.gmra.mrb[0].mxu0 %v1677
        %v1804 = vpop.f32.mrb[0].mxu0
        %v1805 = vadd.f32 %v1711, %v1804
        %v1806 = vpop.f32.mrb[0].mxu0
        %1807 = vmatprep.mubr.f32.mxu0 0.0
        %1808 = vmatmul.mubr.f32.gmra.mrb[0].mxu0 %v1678
        %v1809 = vpop.f32.mrb[0].mxu0
        %v1810 = vadd.f32 %v1711, %v1809
        %v1811 = vpop.f32.mrb[0].mxu0
        %1812 = vmatprep.mubr.f32.mxu0 0.0
        %1813 = vmatmul.mubr.f32.gmra.mrb[0].mxu0 %v1679
        %v1814 = vpop.f32.mrb[0].mxu0
        %v1815 = vadd.f32 %v1711, %v1814
        %v1816 = vpop.f32.mrb[0].mxu0
        %1817 = vmatprep.mubr.f32.mxu0 0.0
        %1818 = vmatmul.mubr.f32.gmra.mrb[0].mxu0 %v1680
        %v1819 = vpop.f32.mrb[0].mxu0
        %v1820 = vadd.f32 %v1711, %v1819
        %v1821 = vpop.f32.mrb[0].mxu0
        %1822 = vmatprep.mubr.f32.mxu0 0.0
        %1823 = vmatmul.mubr.f32.gmra.mrb[0].mxu0 %v1681
        %v1824 = vpop.f32.mrb[0].mxu0
        %v1825 = vadd.f32 %v1711, %v1824
        %v1826 = vpop.f32.mrb[0].mxu0
        %1827 = vmatprep.mubr.f32.mxu0 0.0
        %1828 = vmatmul.mubr.f32.gmra.mrb[0].mxu0 %v1682
        %v1829 = vpop.f32.mrb[0].mxu0
        %v1830 = vadd.f32 %v1711, %v1829
        %v1831 = vpop.f32.mrb[0].mxu0
        %1832 = vmatprep.mubr.f32.mxu0 0.0
        %1833 = vmatmul.mubr.f32.gmra.mrb[0].mxu0 %v1683
        %v1834 = vpop.f32.mrb[0].mxu0
        %v1835 = vadd.f32 %v1711, %v1834
        %v1836 = vpop.f32.mrb[0].mxu0
        %1837 = vmatprep.mubr.f32.mxu0 0.0
        %1838 = vmatmul.mubr.f32.gmra.mrb[0].mxu0 %v1684
        %v1839 = vpop.f32.mrb[0].mxu0
        %v1840 = vadd.f32 %v1711, %v1839
        %v1841 = vpop.f32.mrb[0].mxu0
        %1842 = vmatprep.mubr.f32.mxu0 0.0
        %1843 = vmatmul.mubr.f32.gmra.mrb[0].mxu0 %v1685
        %v1844 = vpop.f32.mrb[0].mxu0
        %v1845 = vadd.f32 %v1711, %v1844
        %v1846 = vpop.f32.mrb[0].mxu0
        %1847 = vmatprep.mubr.f32.mxu0 0.0
        %1848 = vmatmul.mubr.f32.gmra.mrb[0].mxu0 %v1686
        %v1849 = vpop.f32.mrb[0].mxu0
        %v1850 = vadd.f32 %v1711, %v1849
        %v1851 = vpop.f32.mrb[0].mxu0
        %1852 = vmatprep.mubr.f32.mxu0 0.0
        %1853 = vmatmul.mubr.f32.gmra.mrb[0].mxu0 %v1687
        %v1854 = vpop.f32.mrb[0].mxu0
        %v1855 = vadd.f32 %v1711, %v1854
        %v1856 = vpop.f32.mrb[0].mxu0
        %1857 = vdwg.mxu0
        %v1858 = vmax.f32 %v1780, 0.0
        %v1859 = vmax.f32 %v1785, 0.0
        %v1860 = vmax.f32 %v1790, 0.0
        %v1861 = vmax.f32 %v1795, 0.0
        %v1862 = vmax.f32 %v1800, 0.0
        %v1863 = vmax.f32 %v1805, 0.0
        %v1864 = vmax.f32 %v1810, 0.0
        %v1865 = vmax.f32 %v1815, 0.0
        %v1866 = vmax.f32 %v1820, 0.0
        %v1867 = vmax.f32 %v1825, 0.0
        %v1868 = vmax.f32 %v1830, 0.0
        %v1869 = vmax.f32 %v1835, 0.0
        %v1870 = vmax.f32 %v1840, 0.0
        %v1871 = vmax.f32 %v1845, 0.0
        %v1872 = vmax.f32 %v1850, 0.0
        %v1873 = vmax.f32 %v1855, 0.0
        %s1874 = scalar_lea.vmem [#allocation8], 128
        %v1875 = vld [vmem:[%s1874] sm:$0xff]
        %v1876 = vld [vmem:[%s1874 + $0x8] sm:$0xff]
        %v1877 = vld [vmem:[%s1874 + $0x10] sm:$0xff]
        %v1878 = vld [vmem:[%s1874 + $0x18] sm:$0xff]
        %v1879 = vld [vmem:[%s1874 + $0x20] sm:$0xff]
        %v1880 = vld [vmem:[%s1874 + $0x28] sm:$0xff]
        %v1881 = vld [vmem:[%s1874 + $0x30] sm:$0xff]
        %v1882 = vld [vmem:[%s1874 + $0x38] sm:$0xff]
        %v1883 = vld [vmem:[%s1874 + $0x40] sm:$0xff]
        %v1884 = vld [vmem:[%s1874 + $0x48] sm:$0xff]
        %v1885 = vld [vmem:[%s1874 + $0x50] sm:$0xff]
        %v1886 = vld [vmem:[%s1874 + $0x58] sm:$0xff]
        %v1887 = vld [vmem:[%s1874 + $0x60] sm:$0xff]
        %v1888 = vld [vmem:[%s1874 + $0x68] sm:$0xff]
        %v1889 = vld [vmem:[%s1874 + $0x70] sm:$0xff]
        %v1890 = vld [vmem:[%s1874 + $0x78] sm:$0xff]
        %s1891 = scalar_lea.vmem %s10, 1
        %v1892 = vld [vmem:[%s1891] sm:$0x1]
        %v1894 = vlaneseq
        %v1895 = vshrl.u32 %v1894, 7
        %v1896 = vsub.s32 0, %v1895
        %v1897 = vrot.slane %v1892, %v1896
        %1899 = vmatprep.subr.mxu0 0.0
        %1900 = vmatpush1.msra.mxu0 %v1875
        %1901 = vmatprep.subr.mxu0 0.0
        %1902 = vmatpush1.msra.mxu0 %v1876
        %1903 = vmatprep.subr.mxu0 0.0
        %1904 = vmatpush1.msra.mxu0 %v1877
        %1905 = vmatprep.subr.mxu0 0.0
        %1906 = vmatpush1.msra.mxu0 %v1878
        %1907 = vmatprep.subr.mxu0 0.0
        %1908 = vmatpush1.msra.mxu0 %v1879
        %1909 = vmatprep.subr.mxu0 0.0
        %1910 = vmatpush1.msra.mxu0 %v1880
        %1911 = vmatprep.subr.mxu0 0.0
        %1912 = vmatpush1.msra.mxu0 %v1881
        %1913 = vmatprep.subr.mxu0 0.0
        %1914 = vmatpush1.msra.mxu0 %v1882
        %1915 = vmatprep.subr.mxu0 0.0
        %1916 = vmatpush1.msra.mxu0 %v1883
        %1917 = vmatprep.subr.mxu0 0.0
        %1918 = vmatpush1.msra.mxu0 %v1884
        %1919 = vmatprep.subr.mxu0 0.0
        %1920 = vmatpush1.msra.mxu0 %v1885
        %1921 = vmatprep.subr.mxu0 0.0
        %1922 = vmatpush1.msra.mxu0 %v1886
        %1923 = vmatprep.subr.mxu0 0.0
        %1924 = vmatpush1.msra.mxu0 %v1887
        %1925 = vmatprep.subr.mxu0 0.0
        %1926 = vmatpush1.msra.mxu0 %v1888
        %1927 = vmatprep.subr.mxu0 0.0
        %1928 = vmatpush1.msra.mxu0 %v1889
        %1929 = vmatprep.subr.mxu0 0.0
        %1930 = vmatpush1.msra.mxu0 %v1890
        %1931 = vmatprep.subr.mxu0 0.0
        %1932 = vmatpush1.msra.mxu0 0.0
        %1933 = vmatprep.subr.mxu0 0.0
        %1934 = vmatpush1.msra.mxu0 0.0
        %1935 = vmatprep.subr.mxu0 0.0
        %1936 = vmatpush1.msra.mxu0 0.0
        %1937 = vmatprep.subr.mxu0 0.0
        %1938 = vmatpush1.msra.mxu0 0.0
        %1939 = vmatprep.subr.mxu0 0.0
        %1940 = vmatpush1.msra.mxu0 0.0
        %1941 = vmatprep.subr.mxu0 0.0
        %1942 = vmatpush1.msra.mxu0 0.0
        %1943 = vmatprep.subr.mxu0 0.0
        %1944 = vmatpush1.msra.mxu0 0.0
        %1945 = vmatprep.subr.mxu0 0.0
        %1946 = vmatpush1.msra.mxu0 0.0
        %1947 = vmatprep.subr.mxu0 0.0
        %1948 = vmatpush1.msra.mxu0 0.0
        %1949 = vmatprep.subr.mxu0 0.0
        %1950 = vmatpush1.msra.mxu0 0.0
        %1951 = vmatprep.subr.mxu0 0.0
        %1952 = vmatpush1.msra.mxu0 0.0
        %1953 = vmatprep.subr.mxu0 0.0
        %1954 = vmatpush1.msra.mxu0 0.0
        %1955 = vmatprep.subr.mxu0 0.0
        %1956 = vmatpush1.msra.mxu0 0.0
        %1957 = vmatprep.subr.mxu0 0.0
        %1958 = vmatpush1.msra.mxu0 0.0
        %1959 = vmatprep.subr.mxu0 0.0
        %1960 = vmatpush1.msra.mxu0 0.0
        %1961 = vmatprep.subr.mxu0 0.0
        %1962 = vmatpush1.msra.mxu0 0.0
        %1963 = vmatprep.mubr.f32.mxu0 0.0
        %1964 = vmatmul.mubr.f32.gmra.mrb[0].mxu0 %v1858
        %v1965 = vpop.f32.mrb[0].mxu0
        %v1966 = vadd.f32 %v1897, %v1965
        %v1967 = vpop.f32.mrb[0].mxu0
        %1968 = vmatprep.mubr.f32.mxu0 0.0
        %1969 = vmatmul.mubr.f32.gmra.mrb[0].mxu0 %v1859
        %v1970 = vpop.f32.mrb[0].mxu0
        %v1971 = vadd.f32 %v1897, %v1970
        %v1972 = vpop.f32.mrb[0].mxu0
        %1973 = vmatprep.mubr.f32.mxu0 0.0
        %1974 = vmatmul.mubr.f32.gmra.mrb[0].mxu0 %v1860
        %v1975 = vpop.f32.mrb[0].mxu0
        %v1976 = vadd.f32 %v1897, %v1975
        %v1977 = vpop.f32.mrb[0].mxu0
        %1978 = vmatprep.mubr.f32.mxu0 0.0
        %1979 = vmatmul.mubr.f32.gmra.mrb[0].mxu0 %v1861
        %v1980 = vpop.f32.mrb[0].mxu0
        %v1981 = vadd.f32 %v1897, %v1980
        %v1982 = vpop.f32.mrb[0].mxu0
        %1983 = vmatprep.mubr.f32.mxu0 0.0
        %1984 = vmatmul.mubr.f32.gmra.mrb[0].mxu0 %v1862
        %v1985 = vpop.f32.mrb[0].mxu0
        %v1986 = vadd.f32 %v1897, %v1985
        %v1987 = vpop.f32.mrb[0].mxu0
        %1988 = vmatprep.mubr.f32.mxu0 0.0
        %1989 = vmatmul.mubr.f32.gmra.mrb[0].mxu0 %v1863
        %v1990 = vpop.f32.mrb[0].mxu0
        %v1991 = vadd.f32 %v1897, %v1990
        %v1992 = vpop.f32.mrb[0].mxu0
        %1993 = vmatprep.mubr.f32.mxu0 0.0
        %1994 = vmatmul.mubr.f32.gmra.mrb[0].mxu0 %v1864
        %v1995 = vpop.f32.mrb[0].mxu0
        %v1996 = vadd.f32 %v1897, %v1995
        %v1997 = vpop.f32.mrb[0].mxu0
        %1998 = vmatprep.mubr.f32.mxu0 0.0
        %1999 = vmatmul.mubr.f32.gmra.mrb[0].mxu0 %v1865
        %v2000 = vpop.f32.mrb[0].mxu0
        %v2001 = vadd.f32 %v1897, %v2000
        %v2002 = vpop.f32.mrb[0].mxu0
        %2003 = vmatprep.mubr.f32.mxu0 0.0
        %2004 = vmatmul.mubr.f32.gmra.mrb[0].mxu0 %v1866
        %v2005 = vpop.f32.mrb[0].mxu0
        %v2006 = vadd.f32 %v1897, %v2005
        %v2007 = vpop.f32.mrb[0].mxu0
        %2008 = vmatprep.mubr.f32.mxu0 0.0
        %2009 = vmatmul.mubr.f32.gmra.mrb[0].mxu0 %v1867
        %v2010 = vpop.f32.mrb[0].mxu0
        %v2011 = vadd.f32 %v1897, %v2010
        %v2012 = vpop.f32.mrb[0].mxu0
        %2013 = vmatprep.mubr.f32.mxu0 0.0
        %2014 = vmatmul.mubr.f32.gmra.mrb[0].mxu0 %v1868
        %v2015 = vpop.f32.mrb[0].mxu0
        %v2016 = vadd.f32 %v1897, %v2015
        %v2017 = vpop.f32.mrb[0].mxu0
        %2018 = vmatprep.mubr.f32.mxu0 0.0
        %2019 = vmatmul.mubr.f32.gmra.mrb[0].mxu0 %v1869
        %v2020 = vpop.f32.mrb[0].mxu0
        %v2021 = vadd.f32 %v1897, %v2020
        %v2022 = vpop.f32.mrb[0].mxu0
        %2023 = vmatprep.mubr.f32.mxu0 0.0
        %2024 = vmatmul.mubr.f32.gmra.mrb[0].mxu0 %v1870
        %v2025 = vpop.f32.mrb[0].mxu0
        %v2026 = vadd.f32 %v1897, %v2025
        %v2027 = vpop.f32.mrb[0].mxu0
        %2028 = vmatprep.mubr.f32.mxu0 0.0
        %2029 = vmatmul.mubr.f32.gmra.mrb[0].mxu0 %v1871
        %v2030 = vpop.f32.mrb[0].mxu0
        %v2031 = vadd.f32 %v1897, %v2030
        %v2032 = vpop.f32.mrb[0].mxu0
        %2033 = vmatprep.mubr.f32.mxu0 0.0
        %2034 = vmatmul.mubr.f32.gmra.mrb[0].mxu0 %v1872
        %v2035 = vpop.f32.mrb[0].mxu0
        %v2036 = vadd.f32 %v1897, %v2035
        %v2037 = vpop.f32.mrb[0].mxu0
        %2038 = vmatprep.mubr.f32.mxu0 0.0
        %2039 = vmatmul.mubr.f32.gmra.mrb[0].mxu0 %v1873
        %v2040 = vpop.f32.mrb[0].mxu0
        %v2041 = vadd.f32 %v1897, %v2040
        %v2042 = vpop.f32.mrb[0].mxu0
        %2043 = vdwg.mxu0
        %v2044 = vadd.f32 %v1966, %v1448
        %v2045 = vadd.f32 %v1971, %v1449
        %v2046 = vadd.f32 %v1976, %v1450
        %v2047 = vadd.f32 %v1981, %v1451
        %v2048 = vadd.f32 %v1986, %v1452
        %v2049 = vadd.f32 %v1991, %v1453
        %v2050 = vadd.f32 %v1996, %v1454
        %v2051 = vadd.f32 %v2001, %v1455
        %v2052 = vadd.f32 %v2006, %v1456
        %v2053 = vadd.f32 %v2011, %v1457
        %v2054 = vadd.f32 %v2016, %v1458
        %v2055 = vadd.f32 %v2021, %v1459
        %v2056 = vadd.f32 %v2026, %v1460
        %v2057 = vadd.f32 %v2031, %v1461
        %v2058 = vadd.f32 %v2036, %v1462
        %v2059 = vadd.f32 %v2041, %v1463
        %2060 = vst [vmem:[%s448] sm:$0xff] %v2044
        %2061 = vst [vmem:[%s448 + $0x8] sm:$0xff] %v2045
        %2062 = vst [vmem:[%s448 + $0x10] sm:$0xff] %v2046
        %2063 = vst [vmem:[%s448 + $0x18] sm:$0xff] %v2047
        %2064 = vst [vmem:[%s448 + $0x20] sm:$0xff] %v2048
        %2065 = vst [vmem:[%s448 + $0x28] sm:$0xff] %v2049
        %2066 = vst [vmem:[%s448 + $0x30] sm:$0xff] %v2050
        %2067 = vst [vmem:[%s448 + $0x38] sm:$0xff] %v2051
        %2068 = vst [vmem:[%s448 + $0x40] sm:$0xff] %v2052
        %2069 = vst [vmem:[%s448 + $0x48] sm:$0xff] %v2053
        %2070 = vst [vmem:[%s448 + $0x50] sm:$0xff] %v2054
        %2071 = vst [vmem:[%s448 + $0x58] sm:$0xff] %v2055
        %2072 = vst [vmem:[%s448 + $0x60] sm:$0xff] %v2056
        %2073 = vst [vmem:[%s448 + $0x68] sm:$0xff] %v2057
        %2074 = vst [vmem:[%s448 + $0x70] sm:$0xff] %v2058
        %2075 = vst [vmem:[%s448 + $0x78] sm:$0xff] %v2059
        %s2076 = sand.u32 %s274, 1
        %s2077 = scalar_lea.sflag [#allocation4], %s2076
        %s2078 = sand.u32 %s274, 1
        %s2079 = smul.addr %s2078, 128
        %s2080 = scalar_lea.vmem [#allocation10], %s2079
        // Predicated region
        $region81: #{tpu_custom_call.1} parent=63 // pred_check
          %p2081 = pneg %p284
        $region82: #{tpu_custom_call.1} parent=63 // pred_check_branch
          %2083 = sbr.rel (%p2081) target = $region84
        $region83: #{tpu_custom_call.1} parent=63 // pred_region
          %s2084 = smul.u32 16, %s30
          %s2086 = ssub.s32 2048, 2048
          %2087 = vsyncadd %s2077, %s2086
          %s2088 = smul.addr %s2084, 128
          %s2089 = scalar_lea.hbm %s11, %s2088
          %s2090 = sshll.u32 %s2080, 4
          %s2091 = int_to_ptr.vmem [resolvable:$true] %s2090
          %2096 = dma.vmem_to_hbm [thread:$0]  %s2091, 2048, %s2089, %s2077, 128, 128, 8
        $region84: #{tpu_custom_call.1} parent=63 // pred_fallthru
          _
      $region64: #{tpu_custom_call.1} parent=5 // pred_fallthru
        _
      %p2097 = scmp.le.s32.totalorder 2, %s25
      // Predicated region
      $region85: #{tpu_custom_call.1} parent=5 // pred_check
        %p2098 = pneg %p2097
      $region86: #{tpu_custom_call.1} parent=5 // pred_check_branch
        %2100 = sbr.rel (%p2098) target = $region88
      $region87: #{tpu_custom_call.1} parent=5 // pred_region
        %s2101 = ssub.s32 %s25, 2
        // Predicated region
        $region89: #{tpu_custom_call.1} parent=87 // pred_check
          %p2102 = pneg %p290
        $region90: #{tpu_custom_call.1} parent=87 // pred_check_branch
          %2104 = sbr.rel (%p2102) target = $region92
        $region91: #{tpu_custom_call.1} parent=87 // pred_region
          %s2105 = sand.u32 %s275, 1
          %s2106 = scalar_lea.sflag [#allocation4], %s2105
          %s2107 = sand.u32 %s275, 1
          %s2108 = smul.addr %s2107, 128
          %s2109 = scalar_lea.vmem [#allocation10], %s2108
          %2110 = dma.done %s2106, 2048
        $region92: #{tpu_custom_call.1} parent=87 // pred_fallthru
          _
      $region88: #{tpu_custom_call.1} parent=5 // pred_fallthru
        _
    $region6: #{tpu_custom_call.1} parent=1 // loop_footer
      %s29 = sadd.s32 1, %s25
    $region7: #{tpu_custom_call.1} parent=1 // loop_footer_branch
      %24 = sbr.rel target = $region3
    $region8: #{tpu_custom_call.1} parent=1 // loop_exit
      _
    %2111 = vsyncpa [#allocation3], 1
    %s2112 = scalar_lea.sflag [#allocation3], 1
    %2113 = vsyncpa %s2112, 1
    %2114 = vsyncpa [#allocation6], 1
    %2115 = vsyncpa [#allocation9], 1
    %2116 = vsyncpa [#allocation4], 1
    %s2117 = scalar_lea.sflag [#allocation4], 1
    %2118 = vsyncpa %s2117, 1

</llo_original>
